<compile_context>
chip_gen: v5e
topology: v5e:2x2
jax: 0.10.0
libtpu: 0.0.40
codegen_flags: <defaults>
</compile_context>

<pallas_src>
import numpy as np
import jax
import jax.numpy as jnp
from jax import lax
from jax.experimental import pallas as pl
from jax.experimental.pallas import tpu as pltpu


# ----------------------- relative position index (host) ----------------------

def build_relative_position_index(window_size):
    """Exactly mirrors the PyTorch __init__ buffer construction."""
    Wh, Ww = window_size
    num_relative_distance = (2 * Wh - 1) * (2 * Ww - 1) + 3
    coords = np.stack(np.meshgrid(np.arange(Wh), np.arange(Ww), indexing="ij"))
    coords_flatten = coords.reshape(2, -1)
    rel = coords_flatten[:, :, None] - coords_flatten[:, None, :]
    rel = rel.transpose(1, 2, 0).astype(np.int64)
    rel[:, :, 0] += Wh - 1
    rel[:, :, 1] += Ww - 1
    rel[:, :, 0] *= 2 * Ww - 1
    P = Wh * Ww
    rpi = np.zeros((P + 1, P + 1), dtype=np.int64)
    rpi[1:, 1:] = rel.sum(-1)
    rpi[0, 0:] = num_relative_distance - 3
    rpi[0:, 0] = num_relative_distance - 2
    rpi[0, 0] = num_relative_distance - 1
    return rpi, num_relative_distance


# --------------------- one-time parameter preparation -------------------------

def prepare_params(params, num_heads, window_size, rel_pos_bias=None):
    """Done ONCE (not per forward): transpose weights, split per head, fold the
    softmax scale into the q projection, and pre-gather the relative position
    bias table into an (H, N, N) tensor."""
    qkv_w = jnp.asarray(params["qkv_weight"])           # (3*AHD, C)  torch layout
    three_ahd, C = qkv_w.shape
    AHD = three_ahd // 3
    H = num_heads
    D = AHD // H
    scale = D ** (-0.5)

    w_t = qkv_w.T                                       # (C, 3*AHD) == F.linear W^T
    # scale folded into the q weight/bias:  (x@Wq^T + bq)*scale == x@(s*Wq^T) + s*bq
    wq = (w_t[:, 0 * AHD:1 * AHD] * scale).reshape(C, H, D).transpose(1, 0, 2)  # (H,C,D)
    wk = (w_t[:, 1 * AHD:2 * AHD]).reshape(C, H, D).transpose(1, 0, 2)          # (H,C,D)
    wv = (w_t[:, 2 * AHD:3 * AHD]).reshape(C, H, D).transpose(1, 0, 2)          # (H,C,D)
    bq = (jnp.asarray(params["q_bias"]) * scale).reshape(H, 1, D)
    # k bias is identically zero in the module (torch.zeros_like(v_bias)) -> omitted
    bv = jnp.asarray(params["v_bias"]).reshape(H, 1, D)

    N = window_size[0] * window_size[1] + 1
    rpi, _ = build_relative_position_index(window_size)
    rpb = jnp.asarray(params["rel_pos_bias_table"])[jnp.asarray(rpi.reshape(-1))]
    rpb = rpb.reshape(N, N, H).transpose(2, 0, 1)       # (H, N, N)
    if rel_pos_bias is not None:                        # optional shared bias, folded once
        rpb = rpb + rel_pos_bias

    wp = jnp.asarray(params["proj_weight"]).T.reshape(H, D, C)   # (AHD,C) -> (H,D,C)
    bp = jnp.asarray(params["proj_bias"]).reshape(1, C)

    return dict(wq=wq, wk=wk, wv=wv, bq=bq, bv=bv, rpb=rpb, wp=wp, bp=bp)


# ----------------------------- fused Pallas kernel ----------------------------

def fused_beit_attention(x, prep):
    """x: (B, N, C). Returns (B, N, C). One grid step per batch; everything
    (QKV proj, per-head attention, output proj) stays in VMEM/vregs."""
    B, N, C = x.shape
    wq, wk, wv = prep["wq"], prep["wk"], prep["wv"]      # (H, C, D)
    bq, bv = prep["bq"], prep["bv"]                      # (H, 1, D)
    rpb = prep["rpb"]                                    # (H, N, N)
    wp = prep["wp"]                                      # (H, D, C)
    bp = prep["bp"]                                      # (1, C)
    H, _, D = wq.shape

    def kernel(x_ref, wq_ref, wk_ref, wv_ref, bq_ref, bv_ref,
               rpb_ref, wp_ref, bp_ref, o_ref):
        xb = x_ref[0]                                    # (N, C)
        out_b = bp_ref[...]                              # (1, C); broadcasts on first add
        # Static unroll over heads (H is tiny); only aligned leading-dim indexing.
        for h in range(H):
            # scale is pre-folded into wq/bq, so no q * scale here.
            q = jnp.dot(xb, wq_ref[h], preferred_element_type=jnp.float32) + bq_ref[h]
            k = jnp.dot(xb, wk_ref[h], preferred_element_type=jnp.float32)
            v = jnp.dot(xb, wv_ref[h], preferred_element_type=jnp.float32) + bv_ref[h]
            # scores: contract the D axis of q and k directly (no k.T materialized)
            s = lax.dot_general(q, k, (((1,), (1,)), ((), ())),
                                preferred_element_type=jnp.float32)      # (N, N)
            s = s + rpb_ref[h]
            s = s - jnp.max(s, axis=-1, keepdims=True)                   # stable softmax
            p = jnp.exp(s)
            p = p * pl.reciprocal(jnp.sum(p, axis=-1, keepdims=True), approx=True)
            ctx_h = jnp.dot(p, v, preferred_element_type=jnp.float32)    # (N, D)
            # output projection folded per head: out = bias + sum_h ctx_h @ Wp[h]
            out_b = out_b + jnp.dot(ctx_h, wp_ref[h],
                                    preferred_element_type=jnp.float32)  # (N, C)
        o_ref[0] = out_b.astype(o_ref.dtype)             # lane-dense (N, C) slab

    def _whole(shape):
        # full array, constant block index -> DMA'd once, reused by every step
        return pl.BlockSpec(shape, lambda b, _n=len(shape): (0,) * _n)

    return pl.pallas_call(
        kernel,
        out_shape=jax.ShapeDtypeStruct((B, N, C), x.dtype),
        grid=(B,),
        in_specs=[
            pl.BlockSpec((1, N, C), lambda b: (b, 0, 0)),   # x: one batch per step
            _whole(wq.shape), _whole(wk.shape), _whole(wv.shape),
            _whole(bq.shape), _whole(bv.shape),
            _whole(rpb.shape), _whole(wp.shape), _whole(bp.shape),
        ],
        out_specs=pl.BlockSpec((1, N, C), lambda b: (b, 0, 0)),
        compiler_params=pltpu.CompilerParams(
            dimension_semantics=("parallel",)),             # batches independent
    )(x, wq, wk, wv, bq, bv, rpb, wp, bp)


def beit_attention_forward(x, prep):
    return fused_beit_attention(x, prep)


# --------------------------- pure-jnp reference -------------------------------

def _reference_forward(x, params, num_heads, window_size, rel_pos_bias=None):
    """Mirrors the PyTorch forward exactly (exact softmax), for a sanity check."""
    B, N, C = x.shape
    hd = C // num_heads
    scale = hd ** (-0.5)
    qkv_bias = jnp.concatenate(
        [params["q_bias"], jnp.zeros_like(params["v_bias"]), params["v_bias"]])
    qkv = x @ params["qkv_weight"].T + qkv_bias
    qkv = qkv.reshape(B, N, 3, num_heads, hd).transpose(2, 0, 3, 1, 4)
    q, k, v = qkv[0] * scale, qkv[1], qkv[2]
    attn = jnp.einsum("bhnd,bhmd->bhnm", q, k)
    rpi, _ = build_relative_position_index(window_size)
    rpb = params["rel_pos_bias_table"][jnp.asarray(rpi.reshape(-1))]
    rpb = rpb.reshape(N, N, num_heads).transpose(2, 0, 1)
    attn = attn + rpb[None]
    if rel_pos_bias is not None:
        attn = attn + rel_pos_bias
    attn = jax.nn.softmax(attn, axis=-1)
    out = jnp.einsum("bhnm,bhmd->bhnd", attn, v).transpose(0, 2, 1, 3).reshape(B, N, -1)
    return out @ params["proj_weight"].T + params["proj_bias"]


# ---------------------------------- main --------------------------------------

if __name__ == "__main__":
    # small config consistent with the module
    B, num_heads, dim = 2, 4, 32
    window_size = (3, 3)
    N = window_size[0] * window_size[1] + 1              # 10 tokens (patches + cls)
    head_dim = dim // num_heads
    all_head_dim = head_dim * num_heads
    _, num_rel_dist = build_relative_position_index(window_size)

    key = jax.random.PRNGKey(0)
    k_x, k_qkv, k_proj_w, k_proj_b, k_tab, k_qb, k_vb = jax.random.split(key, 7)

    x = jax.random.normal(k_x, (B, N, dim), dtype=jnp.float32)
    params = {
        "qkv_weight": 0.05 * jax.random.normal(k_qkv, (3 * all_head_dim, dim), jnp.float32),
        "q_bias": 0.05 * jax.random.normal(k_qb, (all_head_dim,), jnp.float32),
        "v_bias": 0.05 * jax.random.normal(k_vb, (all_head_dim,), jnp.float32),
        "proj_weight": 0.05 * jax.random.normal(k_proj_w, (dim, all_head_dim), jnp.float32),
        "proj_bias": 0.05 * jax.random.normal(k_proj_b, (dim,), jnp.float32),
        "rel_pos_bias_table": 0.02 * jax.random.normal(k_tab, (num_rel_dist, num_heads), jnp.float32),
    }

    prep = prepare_params(params, num_heads, window_size, rel_pos_bias=None)

    out = beit_attention_forward(x, prep)
    out = jax.block_until_ready(out)

    ref = _reference_forward(x, params, num_heads, window_size)
    assert out.shape == (B, N, dim)
    err = float(np.max(np.abs(np.asarray(out) - np.asarray(ref))))
    # Tolerance slightly looser than pure-f32 because the softmax denominator uses
    # the EUP approximate reciprocal (pl.reciprocal(..., approx=True)); all matmuls
    # and the rest of the softmax math are exact f32.
    assert err < 2e-3, f"max abs err {err}"

    print("KERNEL_OK")
</pallas_src>

<mosaic_0001>
module attributes {stable_mosaic.version = 11 : i64} {
  func.func @kernel(%arg0: i32, %arg1: memref<1x10x32xf32, #tpu.memory_space<vmem>>, %arg2: memref<4x32x8xf32, #tpu.memory_space<vmem>>, %arg3: memref<4x32x8xf32, #tpu.memory_space<vmem>>, %arg4: memref<4x32x8xf32, #tpu.memory_space<vmem>>, %arg5: memref<4x1x8xf32, #tpu.memory_space<vmem>>, %arg6: memref<4x1x8xf32, #tpu.memory_space<vmem>>, %arg7: memref<4x10x10xf32, #tpu.memory_space<vmem>>, %arg8: memref<4x8x32xf32, #tpu.memory_space<vmem>>, %arg9: memref<1x32xf32, #tpu.memory_space<vmem>>, %arg10: memref<1x10x32xf32, #tpu.memory_space<vmem>>) attributes {dimension_semantics = [#tpu.dimension_semantics<parallel>], iteration_bounds = array<i64: 2>, scalar_prefetch = 0 : i64, scratch_operands = 0 : i64, tpu.core_type = #tpu.core_type<tc>, window_params = [{transform_indices = @transform_0, window_bounds = array<i64: 1, 10, 32>}, {pipeline_mode = #tpu.pipeline_mode<synchronous>, transform_indices = @transform_1, window_bounds = array<i64: 4, 32, 8>}, {pipeline_mode = #tpu.pipeline_mode<synchronous>, transform_indices = @transform_2, window_bounds = array<i64: 4, 32, 8>}, {pipeline_mode = #tpu.pipeline_mode<synchronous>, transform_indices = @transform_3, window_bounds = array<i64: 4, 32, 8>}, {pipeline_mode = #tpu.pipeline_mode<synchronous>, transform_indices = @transform_4, window_bounds = array<i64: 4, 1, 8>}, {pipeline_mode = #tpu.pipeline_mode<synchronous>, transform_indices = @transform_5, window_bounds = array<i64: 4, 1, 8>}, {pipeline_mode = #tpu.pipeline_mode<synchronous>, transform_indices = @transform_6, window_bounds = array<i64: 4, 10, 10>}, {pipeline_mode = #tpu.pipeline_mode<synchronous>, transform_indices = @transform_7, window_bounds = array<i64: 4, 8, 32>}, {pipeline_mode = #tpu.pipeline_mode<synchronous>, transform_indices = @transform_8, window_bounds = array<i64: 1, 32>}, {transform_indices = @transform_9, window_bounds = array<i64: 1, 10, 32>}]} {
    %c0 = arith.constant 0 : index
    %c0_0 = arith.constant 0 : index
    %c0_1 = arith.constant 0 : index
    %0 = vector.load %arg1[%c0, %c0_0, %c0_1] : memref<1x10x32xf32, #tpu.memory_space<vmem>>, vector<1x10x32xf32>
    %1 = vector.shape_cast %0 : vector<1x10x32xf32> to vector<10x32xf32>
    %c0_2 = arith.constant 0 : index
    %c0_3 = arith.constant 0 : index
    %2 = vector.load %arg9[%c0_2, %c0_3] : memref<1x32xf32, #tpu.memory_space<vmem>>, vector<1x32xf32>
    %c0_4 = arith.constant 0 : index
    %c0_5 = arith.constant 0 : index
    %c0_6 = arith.constant 0 : index
    %3 = vector.load %arg2[%c0_4, %c0_5, %c0_6] : memref<4x32x8xf32, #tpu.memory_space<vmem>>, vector<1x32x8xf32>
    %4 = vector.shape_cast %3 : vector<1x32x8xf32> to vector<32x8xf32>
    %cst = arith.constant dense<0.000000e+00> : vector<10x8xf32>
    %5 = tpu.matmul %1, %4, %cst {dimension_numbers = #tpu.dot_dimension_numbers<[1], [0], [0], [1], [0, 0, 1, 1], [], []>} : vector<10x32xf32>, vector<32x8xf32>, vector<10x8xf32> -> vector<10x8xf32>
    %c0_7 = arith.constant 0 : index
    %c0_8 = arith.constant 0 : index
    %c0_9 = arith.constant 0 : index
    %6 = vector.load %arg5[%c0_7, %c0_8, %c0_9] : memref<4x1x8xf32, #tpu.memory_space<vmem>>, vector<1x1x8xf32>
    %7 = vector.shape_cast %6 : vector<1x1x8xf32> to vector<1x8xf32>
    %8 = vector.broadcast %7 : vector<1x8xf32> to vector<10x8xf32>
    %9 = arith.addf %5, %8 : vector<10x8xf32>
    %c0_10 = arith.constant 0 : index
    %c0_11 = arith.constant 0 : index
    %c0_12 = arith.constant 0 : index
    %10 = vector.load %arg3[%c0_10, %c0_11, %c0_12] : memref<4x32x8xf32, #tpu.memory_space<vmem>>, vector<1x32x8xf32>
    %11 = vector.shape_cast %10 : vector<1x32x8xf32> to vector<32x8xf32>
    %cst_13 = arith.constant dense<0.000000e+00> : vector<10x8xf32>
    %12 = tpu.matmul %1, %11, %cst_13 {dimension_numbers = #tpu.dot_dimension_numbers<[1], [0], [0], [1], [0, 0, 1, 1], [], []>} : vector<10x32xf32>, vector<32x8xf32>, vector<10x8xf32> -> vector<10x8xf32>
    %c0_14 = arith.constant 0 : index
    %c0_15 = arith.constant 0 : index
    %c0_16 = arith.constant 0 : index
    %13 = vector.load %arg4[%c0_14, %c0_15, %c0_16] : memref<4x32x8xf32, #tpu.memory_space<vmem>>, vector<1x32x8xf32>
    %14 = vector.shape_cast %13 : vector<1x32x8xf32> to vector<32x8xf32>
    %cst_17 = arith.constant dense<0.000000e+00> : vector<10x8xf32>
    %15 = tpu.matmul %1, %14, %cst_17 {dimension_numbers = #tpu.dot_dimension_numbers<[1], [0], [0], [1], [0, 0, 1, 1], [], []>} : vector<10x32xf32>, vector<32x8xf32>, vector<10x8xf32> -> vector<10x8xf32>
    %c0_18 = arith.constant 0 : index
    %c0_19 = arith.constant 0 : index
    %c0_20 = arith.constant 0 : index
    %16 = vector.load %arg6[%c0_18, %c0_19, %c0_20] : memref<4x1x8xf32, #tpu.memory_space<vmem>>, vector<1x1x8xf32>
    %17 = vector.shape_cast %16 : vector<1x1x8xf32> to vector<1x8xf32>
    %18 = vector.broadcast %17 : vector<1x8xf32> to vector<10x8xf32>
    %19 = arith.addf %15, %18 : vector<10x8xf32>
    %cst_21 = arith.constant dense<0.000000e+00> : vector<10x10xf32>
    %20 = tpu.matmul %9, %12, %cst_21 {dimension_numbers = #tpu.dot_dimension_numbers<[1], [1], [0], [0], [0, 0, 1, 0], [], []>} : vector<10x8xf32>, vector<10x8xf32>, vector<10x10xf32> -> vector<10x10xf32>
    %c0_22 = arith.constant 0 : index
    %c0_23 = arith.constant 0 : index
    %c0_24 = arith.constant 0 : index
    %21 = vector.load %arg7[%c0_22, %c0_23, %c0_24] : memref<4x10x10xf32, #tpu.memory_space<vmem>>, vector<1x10x10xf32>
    %22 = vector.shape_cast %21 : vector<1x10x10xf32> to vector<10x10xf32>
    %23 = arith.addf %20, %22 : vector<10x10xf32>
    %cst_25 = arith.constant dense<0xFF800000> : vector<10xf32>
    %24 = vector.multi_reduction <maximumf>, %23, %cst_25 [1] : vector<10x10xf32> to vector<10xf32>
    %25 = vector.shape_cast %24 : vector<10xf32> to vector<10x1xf32>
    %26 = vector.broadcast %25 : vector<10x1xf32> to vector<10x10xf32>
    %27 = arith.subf %23, %26 : vector<10x10xf32>
    %28 = math.exp %27 : vector<10x10xf32>
    %cst_26 = arith.constant dense<0.000000e+00> : vector<10xf32>
    %29 = vector.multi_reduction <add>, %28, %cst_26 [1] : vector<10x10xf32> to vector<10xf32>
    %30 = vector.shape_cast %29 : vector<10xf32> to vector<10x1xf32>
    %31 = tpu.reciprocal %30 {approx = true} : vector<10x1xf32> -> vector<10x1xf32>
    %32 = vector.broadcast %31 : vector<10x1xf32> to vector<10x10xf32>
    %33 = arith.mulf %28, %32 : vector<10x10xf32>
    %cst_27 = arith.constant dense<0.000000e+00> : vector<10x8xf32>
    %34 = tpu.matmul %33, %19, %cst_27 {dimension_numbers = #tpu.dot_dimension_numbers<[1], [0], [0], [1], [0, 0, 1, 1], [], []>} : vector<10x10xf32>, vector<10x8xf32>, vector<10x8xf32> -> vector<10x8xf32>
    %c0_28 = arith.constant 0 : index
    %c0_29 = arith.constant 0 : index
    %c0_30 = arith.constant 0 : index
    %35 = vector.load %arg8[%c0_28, %c0_29, %c0_30] : memref<4x8x32xf32, #tpu.memory_space<vmem>>, vector<1x8x32xf32>
    %36 = vector.shape_cast %35 : vector<1x8x32xf32> to vector<8x32xf32>
    %cst_31 = arith.constant dense<0.000000e+00> : vector<10x32xf32>
    %37 = tpu.matmul %34, %36, %cst_31 {dimension_numbers = #tpu.dot_dimension_numbers<[1], [0], [0], [1], [0, 0, 1, 1], [], []>} : vector<10x8xf32>, vector<8x32xf32>, vector<10x32xf32> -> vector<10x32xf32>
    %38 = vector.broadcast %2 : vector<1x32xf32> to vector<10x32xf32>
    %39 = arith.addf %38, %37 : vector<10x32xf32>
    %c1 = arith.constant 1 : index
    %c0_32 = arith.constant 0 : index
    %c0_33 = arith.constant 0 : index
    %40 = vector.load %arg2[%c1, %c0_32, %c0_33] : memref<4x32x8xf32, #tpu.memory_space<vmem>>, vector<1x32x8xf32>
    %41 = vector.shape_cast %40 : vector<1x32x8xf32> to vector<32x8xf32>
    %cst_34 = arith.constant dense<0.000000e+00> : vector<10x8xf32>
    %42 = tpu.matmul %1, %41, %cst_34 {dimension_numbers = #tpu.dot_dimension_numbers<[1], [0], [0], [1], [0, 0, 1, 1], [], []>} : vector<10x32xf32>, vector<32x8xf32>, vector<10x8xf32> -> vector<10x8xf32>
    %c1_35 = arith.constant 1 : index
    %c0_36 = arith.constant 0 : index
    %c0_37 = arith.constant 0 : index
    %43 = vector.load %arg5[%c1_35, %c0_36, %c0_37] : memref<4x1x8xf32, #tpu.memory_space<vmem>>, vector<1x1x8xf32>
    %44 = vector.shape_cast %43 : vector<1x1x8xf32> to vector<1x8xf32>
    %45 = vector.broadcast %44 : vector<1x8xf32> to vector<10x8xf32>
    %46 = arith.addf %42, %45 : vector<10x8xf32>
    %c1_38 = arith.constant 1 : index
    %c0_39 = arith.constant 0 : index
    %c0_40 = arith.constant 0 : index
    %47 = vector.load %arg3[%c1_38, %c0_39, %c0_40] : memref<4x32x8xf32, #tpu.memory_space<vmem>>, vector<1x32x8xf32>
    %48 = vector.shape_cast %47 : vector<1x32x8xf32> to vector<32x8xf32>
    %cst_41 = arith.constant dense<0.000000e+00> : vector<10x8xf32>
    %49 = tpu.matmul %1, %48, %cst_41 {dimension_numbers = #tpu.dot_dimension_numbers<[1], [0], [0], [1], [0, 0, 1, 1], [], []>} : vector<10x32xf32>, vector<32x8xf32>, vector<10x8xf32> -> vector<10x8xf32>
    %c1_42 = arith.constant 1 : index
    %c0_43 = arith.constant 0 : index
    %c0_44 = arith.constant 0 : index
    %50 = vector.load %arg4[%c1_42, %c0_43, %c0_44] : memref<4x32x8xf32, #tpu.memory_space<vmem>>, vector<1x32x8xf32>
    %51 = vector.shape_cast %50 : vector<1x32x8xf32> to vector<32x8xf32>
    %cst_45 = arith.constant dense<0.000000e+00> : vector<10x8xf32>
    %52 = tpu.matmul %1, %51, %cst_45 {dimension_numbers = #tpu.dot_dimension_numbers<[1], [0], [0], [1], [0, 0, 1, 1], [], []>} : vector<10x32xf32>, vector<32x8xf32>, vector<10x8xf32> -> vector<10x8xf32>
    %c1_46 = arith.constant 1 : index
    %c0_47 = arith.constant 0 : index
    %c0_48 = arith.constant 0 : index
    %53 = vector.load %arg6[%c1_46, %c0_47, %c0_48] : memref<4x1x8xf32, #tpu.memory_space<vmem>>, vector<1x1x8xf32>
    %54 = vector.shape_cast %53 : vector<1x1x8xf32> to vector<1x8xf32>
    %55 = vector.broadcast %54 : vector<1x8xf32> to vector<10x8xf32>
    %56 = arith.addf %52, %55 : vector<10x8xf32>
    %cst_49 = arith.constant dense<0.000000e+00> : vector<10x10xf32>
    %57 = tpu.matmul %46, %49, %cst_49 {dimension_numbers = #tpu.dot_dimension_numbers<[1], [1], [0], [0], [0, 0, 1, 0], [], []>} : vector<10x8xf32>, vector<10x8xf32>, vector<10x10xf32> -> vector<10x10xf32>
    %c1_50 = arith.constant 1 : index
    %c0_51 = arith.constant 0 : index
    %c0_52 = arith.constant 0 : index
    %58 = vector.load %arg7[%c1_50, %c0_51, %c0_52] : memref<4x10x10xf32, #tpu.memory_space<vmem>>, vector<1x10x10xf32>
    %59 = vector.shape_cast %58 : vector<1x10x10xf32> to vector<10x10xf32>
    %60 = arith.addf %57, %59 : vector<10x10xf32>
    %cst_53 = arith.constant dense<0xFF800000> : vector<10xf32>
    %61 = vector.multi_reduction <maximumf>, %60, %cst_53 [1] : vector<10x10xf32> to vector<10xf32>
    %62 = vector.shape_cast %61 : vector<10xf32> to vector<10x1xf32>
    %63 = vector.broadcast %62 : vector<10x1xf32> to vector<10x10xf32>
    %64 = arith.subf %60, %63 : vector<10x10xf32>
    %65 = math.exp %64 : vector<10x10xf32>
    %cst_54 = arith.constant dense<0.000000e+00> : vector<10xf32>
    %66 = vector.multi_reduction <add>, %65, %cst_54 [1] : vector<10x10xf32> to vector<10xf32>
    %67 = vector.shape_cast %66 : vector<10xf32> to vector<10x1xf32>
    %68 = tpu.reciprocal %67 {approx = true} : vector<10x1xf32> -> vector<10x1xf32>
    %69 = vector.broadcast %68 : vector<10x1xf32> to vector<10x10xf32>
    %70 = arith.mulf %65, %69 : vector<10x10xf32>
    %cst_55 = arith.constant dense<0.000000e+00> : vector<10x8xf32>
    %71 = tpu.matmul %70, %56, %cst_55 {dimension_numbers = #tpu.dot_dimension_numbers<[1], [0], [0], [1], [0, 0, 1, 1], [], []>} : vector<10x10xf32>, vector<10x8xf32>, vector<10x8xf32> -> vector<10x8xf32>
    %c1_56 = arith.constant 1 : index
    %c0_57 = arith.constant 0 : index
    %c0_58 = arith.constant 0 : index
    %72 = vector.load %arg8[%c1_56, %c0_57, %c0_58] : memref<4x8x32xf32, #tpu.memory_space<vmem>>, vector<1x8x32xf32>
    %73 = vector.shape_cast %72 : vector<1x8x32xf32> to vector<8x32xf32>
    %cst_59 = arith.constant dense<0.000000e+00> : vector<10x32xf32>
    %74 = tpu.matmul %71, %73, %cst_59 {dimension_numbers = #tpu.dot_dimension_numbers<[1], [0], [0], [1], [0, 0, 1, 1], [], []>} : vector<10x8xf32>, vector<8x32xf32>, vector<10x32xf32> -> vector<10x32xf32>
    %75 = arith.addf %39, %74 : vector<10x32xf32>
    %c2 = arith.constant 2 : index
    %c0_60 = arith.constant 0 : index
    %c0_61 = arith.constant 0 : index
    %76 = vector.load %arg2[%c2, %c0_60, %c0_61] : memref<4x32x8xf32, #tpu.memory_space<vmem>>, vector<1x32x8xf32>
    %77 = vector.shape_cast %76 : vector<1x32x8xf32> to vector<32x8xf32>
    %cst_62 = arith.constant dense<0.000000e+00> : vector<10x8xf32>
    %78 = tpu.matmul %1, %77, %cst_62 {dimension_numbers = #tpu.dot_dimension_numbers<[1], [0], [0], [1], [0, 0, 1, 1], [], []>} : vector<10x32xf32>, vector<32x8xf32>, vector<10x8xf32> -> vector<10x8xf32>
    %c2_63 = arith.constant 2 : index
    %c0_64 = arith.constant 0 : index
    %c0_65 = arith.constant 0 : index
    %79 = vector.load %arg5[%c2_63, %c0_64, %c0_65] : memref<4x1x8xf32, #tpu.memory_space<vmem>>, vector<1x1x8xf32>
    %80 = vector.shape_cast %79 : vector<1x1x8xf32> to vector<1x8xf32>
    %81 = vector.broadcast %80 : vector<1x8xf32> to vector<10x8xf32>
    %82 = arith.addf %78, %81 : vector<10x8xf32>
    %c2_66 = arith.constant 2 : index
    %c0_67 = arith.constant 0 : index
    %c0_68 = arith.constant 0 : index
    %83 = vector.load %arg3[%c2_66, %c0_67, %c0_68] : memref<4x32x8xf32, #tpu.memory_space<vmem>>, vector<1x32x8xf32>
    %84 = vector.shape_cast %83 : vector<1x32x8xf32> to vector<32x8xf32>
    %cst_69 = arith.constant dense<0.000000e+00> : vector<10x8xf32>
    %85 = tpu.matmul %1, %84, %cst_69 {dimension_numbers = #tpu.dot_dimension_numbers<[1], [0], [0], [1], [0, 0, 1, 1], [], []>} : vector<10x32xf32>, vector<32x8xf32>, vector<10x8xf32> -> vector<10x8xf32>
    %c2_70 = arith.constant 2 : index
    %c0_71 = arith.constant 0 : index
    %c0_72 = arith.constant 0 : index
    %86 = vector.load %arg4[%c2_70, %c0_71, %c0_72] : memref<4x32x8xf32, #tpu.memory_space<vmem>>, vector<1x32x8xf32>
    %87 = vector.shape_cast %86 : vector<1x32x8xf32> to vector<32x8xf32>
    %cst_73 = arith.constant dense<0.000000e+00> : vector<10x8xf32>
    %88 = tpu.matmul %1, %87, %cst_73 {dimension_numbers = #tpu.dot_dimension_numbers<[1], [0], [0], [1], [0, 0, 1, 1], [], []>} : vector<10x32xf32>, vector<32x8xf32>, vector<10x8xf32> -> vector<10x8xf32>
    %c2_74 = arith.constant 2 : index
    %c0_75 = arith.constant 0 : index
    %c0_76 = arith.constant 0 : index
    %89 = vector.load %arg6[%c2_74, %c0_75, %c0_76] : memref<4x1x8xf32, #tpu.memory_space<vmem>>, vector<1x1x8xf32>
    %90 = vector.shape_cast %89 : vector<1x1x8xf32> to vector<1x8xf32>
    %91 = vector.broadcast %90 : vector<1x8xf32> to vector<10x8xf32>
    %92 = arith.addf %88, %91 : vector<10x8xf32>
    %cst_77 = arith.constant dense<0.000000e+00> : vector<10x10xf32>
    %93 = tpu.matmul %82, %85, %cst_77 {dimension_numbers = #tpu.dot_dimension_numbers<[1], [1], [0], [0], [0, 0, 1, 0], [], []>} : vector<10x8xf32>, vector<10x8xf32>, vector<10x10xf32> -> vector<10x10xf32>
    %c2_78 = arith.constant 2 : index
    %c0_79 = arith.constant 0 : index
    %c0_80 = arith.constant 0 : index
    %94 = vector.load %arg7[%c2_78, %c0_79, %c0_80] : memref<4x10x10xf32, #tpu.memory_space<vmem>>, vector<1x10x10xf32>
    %95 = vector.shape_cast %94 : vector<1x10x10xf32> to vector<10x10xf32>
    %96 = arith.addf %93, %95 : vector<10x10xf32>
    %cst_81 = arith.constant dense<0xFF800000> : vector<10xf32>
    %97 = vector.multi_reduction <maximumf>, %96, %cst_81 [1] : vector<10x10xf32> to vector<10xf32>
    %98 = vector.shape_cast %97 : vector<10xf32> to vector<10x1xf32>
    %99 = vector.broadcast %98 : vector<10x1xf32> to vector<10x10xf32>
    %100 = arith.subf %96, %99 : vector<10x10xf32>
    %101 = math.exp %100 : vector<10x10xf32>
    %cst_82 = arith.constant dense<0.000000e+00> : vector<10xf32>
    %102 = vector.multi_reduction <add>, %101, %cst_82 [1] : vector<10x10xf32> to vector<10xf32>
    %103 = vector.shape_cast %102 : vector<10xf32> to vector<10x1xf32>
    %104 = tpu.reciprocal %103 {approx = true} : vector<10x1xf32> -> vector<10x1xf32>
    %105 = vector.broadcast %104 : vector<10x1xf32> to vector<10x10xf32>
    %106 = arith.mulf %101, %105 : vector<10x10xf32>
    %cst_83 = arith.constant dense<0.000000e+00> : vector<10x8xf32>
    %107 = tpu.matmul %106, %92, %cst_83 {dimension_numbers = #tpu.dot_dimension_numbers<[1], [0], [0], [1], [0, 0, 1, 1], [], []>} : vector<10x10xf32>, vector<10x8xf32>, vector<10x8xf32> -> vector<10x8xf32>
    %c2_84 = arith.constant 2 : index
    %c0_85 = arith.constant 0 : index
    %c0_86 = arith.constant 0 : index
    %108 = vector.load %arg8[%c2_84, %c0_85, %c0_86] : memref<4x8x32xf32, #tpu.memory_space<vmem>>, vector<1x8x32xf32>
    %109 = vector.shape_cast %108 : vector<1x8x32xf32> to vector<8x32xf32>
    %cst_87 = arith.constant dense<0.000000e+00> : vector<10x32xf32>
    %110 = tpu.matmul %107, %109, %cst_87 {dimension_numbers = #tpu.dot_dimension_numbers<[1], [0], [0], [1], [0, 0, 1, 1], [], []>} : vector<10x8xf32>, vector<8x32xf32>, vector<10x32xf32> -> vector<10x32xf32>
    %111 = arith.addf %75, %110 : vector<10x32xf32>
    %c3 = arith.constant 3 : index
    %c0_88 = arith.constant 0 : index
    %c0_89 = arith.constant 0 : index
    %112 = vector.load %arg2[%c3, %c0_88, %c0_89] : memref<4x32x8xf32, #tpu.memory_space<vmem>>, vector<1x32x8xf32>
    %113 = vector.shape_cast %112 : vector<1x32x8xf32> to vector<32x8xf32>
    %cst_90 = arith.constant dense<0.000000e+00> : vector<10x8xf32>
    %114 = tpu.matmul %1, %113, %cst_90 {dimension_numbers = #tpu.dot_dimension_numbers<[1], [0], [0], [1], [0, 0, 1, 1], [], []>} : vector<10x32xf32>, vector<32x8xf32>, vector<10x8xf32> -> vector<10x8xf32>
    %c3_91 = arith.constant 3 : index
    %c0_92 = arith.constant 0 : index
    %c0_93 = arith.constant 0 : index
    %115 = vector.load %arg5[%c3_91, %c0_92, %c0_93] : memref<4x1x8xf32, #tpu.memory_space<vmem>>, vector<1x1x8xf32>
    %116 = vector.shape_cast %115 : vector<1x1x8xf32> to vector<1x8xf32>
    %117 = vector.broadcast %116 : vector<1x8xf32> to vector<10x8xf32>
    %118 = arith.addf %114, %117 : vector<10x8xf32>
    %c3_94 = arith.constant 3 : index
    %c0_95 = arith.constant 0 : index
    %c0_96 = arith.constant 0 : index
    %119 = vector.load %arg3[%c3_94, %c0_95, %c0_96] : memref<4x32x8xf32, #tpu.memory_space<vmem>>, vector<1x32x8xf32>
    %120 = vector.shape_cast %119 : vector<1x32x8xf32> to vector<32x8xf32>
    %cst_97 = arith.constant dense<0.000000e+00> : vector<10x8xf32>
    %121 = tpu.matmul %1, %120, %cst_97 {dimension_numbers = #tpu.dot_dimension_numbers<[1], [0], [0], [1], [0, 0, 1, 1], [], []>} : vector<10x32xf32>, vector<32x8xf32>, vector<10x8xf32> -> vector<10x8xf32>
    %c3_98 = arith.constant 3 : index
    %c0_99 = arith.constant 0 : index
    %c0_100 = arith.constant 0 : index
    %122 = vector.load %arg4[%c3_98, %c0_99, %c0_100] : memref<4x32x8xf32, #tpu.memory_space<vmem>>, vector<1x32x8xf32>
    %123 = vector.shape_cast %122 : vector<1x32x8xf32> to vector<32x8xf32>
    %cst_101 = arith.constant dense<0.000000e+00> : vector<10x8xf32>
    %124 = tpu.matmul %1, %123, %cst_101 {dimension_numbers = #tpu.dot_dimension_numbers<[1], [0], [0], [1], [0, 0, 1, 1], [], []>} : vector<10x32xf32>, vector<32x8xf32>, vector<10x8xf32> -> vector<10x8xf32>
    %c3_102 = arith.constant 3 : index
    %c0_103 = arith.constant 0 : index
    %c0_104 = arith.constant 0 : index
    %125 = vector.load %arg6[%c3_102, %c0_103, %c0_104] : memref<4x1x8xf32, #tpu.memory_space<vmem>>, vector<1x1x8xf32>
    %126 = vector.shape_cast %125 : vector<1x1x8xf32> to vector<1x8xf32>
    %127 = vector.broadcast %126 : vector<1x8xf32> to vector<10x8xf32>
    %128 = arith.addf %124, %127 : vector<10x8xf32>
    %cst_105 = arith.constant dense<0.000000e+00> : vector<10x10xf32>
    %129 = tpu.matmul %118, %121, %cst_105 {dimension_numbers = #tpu.dot_dimension_numbers<[1], [1], [0], [0], [0, 0, 1, 0], [], []>} : vector<10x8xf32>, vector<10x8xf32>, vector<10x10xf32> -> vector<10x10xf32>
    %c3_106 = arith.constant 3 : index
    %c0_107 = arith.constant 0 : index
    %c0_108 = arith.constant 0 : index
    %130 = vector.load %arg7[%c3_106, %c0_107, %c0_108] : memref<4x10x10xf32, #tpu.memory_space<vmem>>, vector<1x10x10xf32>
    %131 = vector.shape_cast %130 : vector<1x10x10xf32> to vector<10x10xf32>
    %132 = arith.addf %129, %131 : vector<10x10xf32>
    %cst_109 = arith.constant dense<0xFF800000> : vector<10xf32>
    %133 = vector.multi_reduction <maximumf>, %132, %cst_109 [1] : vector<10x10xf32> to vector<10xf32>
    %134 = vector.shape_cast %133 : vector<10xf32> to vector<10x1xf32>
    %135 = vector.broadcast %134 : vector<10x1xf32> to vector<10x10xf32>
    %136 = arith.subf %132, %135 : vector<10x10xf32>
    %137 = math.exp %136 : vector<10x10xf32>
    %cst_110 = arith.constant dense<0.000000e+00> : vector<10xf32>
    %138 = vector.multi_reduction <add>, %137, %cst_110 [1] : vector<10x10xf32> to vector<10xf32>
    %139 = vector.shape_cast %138 : vector<10xf32> to vector<10x1xf32>
    %140 = tpu.reciprocal %139 {approx = true} : vector<10x1xf32> -> vector<10x1xf32>
    %141 = vector.broadcast %140 : vector<10x1xf32> to vector<10x10xf32>
    %142 = arith.mulf %137, %141 : vector<10x10xf32>
    %cst_111 = arith.constant dense<0.000000e+00> : vector<10x8xf32>
    %143 = tpu.matmul %142, %128, %cst_111 {dimension_numbers = #tpu.dot_dimension_numbers<[1], [0], [0], [1], [0, 0, 1, 1], [], []>} : vector<10x10xf32>, vector<10x8xf32>, vector<10x8xf32> -> vector<10x8xf32>
    %c3_112 = arith.constant 3 : index
    %c0_113 = arith.constant 0 : index
    %c0_114 = arith.constant 0 : index
    %144 = vector.load %arg8[%c3_112, %c0_113, %c0_114] : memref<4x8x32xf32, #tpu.memory_space<vmem>>, vector<1x8x32xf32>
    %145 = vector.shape_cast %144 : vector<1x8x32xf32> to vector<8x32xf32>
    %cst_115 = arith.constant dense<0.000000e+00> : vector<10x32xf32>
    %146 = tpu.matmul %143, %145, %cst_115 {dimension_numbers = #tpu.dot_dimension_numbers<[1], [0], [0], [1], [0, 0, 1, 1], [], []>} : vector<10x8xf32>, vector<8x32xf32>, vector<10x32xf32> -> vector<10x32xf32>
    %147 = arith.addf %111, %146 : vector<10x32xf32>
    %c0_116 = arith.constant 0 : index
    %c0_117 = arith.constant 0 : index
    %c0_118 = arith.constant 0 : index
    %148 = vector.load %arg10[%c0_116, %c0_117, %c0_118] : memref<1x10x32xf32, #tpu.memory_space<vmem>>, vector<1x10x32xf32>
    %149 = vector.shape_cast %148 : vector<1x10x32xf32> to vector<10x32xf32>
    %150 = vector.shape_cast %147 : vector<10x32xf32> to vector<1x10x32xf32>
    tpu.vector_store %arg10[%c0_116, %c0_117, %c0_118], %150 {strides = array<i32>} : memref<1x10x32xf32, #tpu.memory_space<vmem>>, vector<1x10x32xf32>,
    return
  }
  func.func @transform_0(%arg0: i32) -> (i32, i32, i32) {
    %c0_i32 = arith.constant 0 : i32
    %c0_i32_0 = arith.constant 0 : i32
    %c0_i32_1 = arith.constant 0 : i32
    return %arg0, %c0_i32, %c0_i32_0 : i32, i32, i32
  }
  func.func @transform_1(%arg0: i32) -> (i32, i32, i32) {
    %c0_i32 = arith.constant 0 : i32
    %c0_i32_0 = arith.constant 0 : i32
    %c0_i32_1 = arith.constant 0 : i32
    %c0_i32_2 = arith.constant 0 : i32
    return %c0_i32, %c0_i32_0, %c0_i32_1 : i32, i32, i32
  }
  func.func @transform_2(%arg0: i32) -> (i32, i32, i32) {
    %c0_i32 = arith.constant 0 : i32
    %c0_i32_0 = arith.constant 0 : i32
    %c0_i32_1 = arith.constant 0 : i32
    %c0_i32_2 = arith.constant 0 : i32
    return %c0_i32, %c0_i32_0, %c0_i32_1 : i32, i32, i32
  }
  func.func @transform_3(%arg0: i32) -> (i32, i32, i32) {
    %c0_i32 = arith.constant 0 : i32
    %c0_i32_0 = arith.constant 0 : i32
    %c0_i32_1 = arith.constant 0 : i32
    %c0_i32_2 = arith.constant 0 : i32
    return %c0_i32, %c0_i32_0, %c0_i32_1 : i32, i32, i32
  }
  func.func @transform_4(%arg0: i32) -> (i32, i32, i32) {
    %c0_i32 = arith.constant 0 : i32
    %c0_i32_0 = arith.constant 0 : i32
    %c0_i32_1 = arith.constant 0 : i32
    %c0_i32_2 = arith.constant 0 : i32
    return %c0_i32, %c0_i32_0, %c0_i32_1 : i32, i32, i32
  }
  func.func @transform_5(%arg0: i32) -> (i32, i32, i32) {
    %c0_i32 = arith.constant 0 : i32
    %c0_i32_0 = arith.constant 0 : i32
    %c0_i32_1 = arith.constant 0 : i32
    %c0_i32_2 = arith.constant 0 : i32
    return %c0_i32, %c0_i32_0, %c0_i32_1 : i32, i32, i32
  }
  func.func @transform_6(%arg0: i32) -> (i32, i32, i32) {
    %c0_i32 = arith.constant 0 : i32
    %c0_i32_0 = arith.constant 0 : i32
    %c0_i32_1 = arith.constant 0 : i32
    %c0_i32_2 = arith.constant 0 : i32
    return %c0_i32, %c0_i32_0, %c0_i32_1 : i32, i32, i32
  }
  func.func @transform_7(%arg0: i32) -> (i32, i32, i32) {
    %c0_i32 = arith.constant 0 : i32
    %c0_i32_0 = arith.constant 0 : i32
    %c0_i32_1 = arith.constant 0 : i32
    %c0_i32_2 = arith.constant 0 : i32
    return %c0_i32, %c0_i32_0, %c0_i32_1 : i32, i32, i32
  }
  func.func @transform_8(%arg0: i32) -> (i32, i32) {
    %c0_i32 = arith.constant 0 : i32
    %c0_i32_0 = arith.constant 0 : i32
    %c0_i32_1 = arith.constant 0 : i32
    return %c0_i32, %c0_i32_0 : i32, i32
  }
  func.func @transform_9(%arg0: i32) -> (i32, i32, i32) {
    %c0_i32 = arith.constant 0 : i32
    %c0_i32_0 = arith.constant 0 : i32
    %c0_i32_1 = arith.constant 0 : i32
    return %arg0, %c0_i32, %c0_i32_0 : i32, i32, i32
  }
}

</mosaic_0001>

<llo_original>
// kernel: tpu_custom_call.1
$region0: #{tpu_custom_call.1}
  #allocation0 [shape = 'u32[]', space=smem, size = 0x4, offset = 0x4, fixed_abs, tag = 'smem constant byte address 0x4 - core index']
  #allocation1 [shape = 'u32[72,128]{1,0:T(1,128)}', space=vmem, size = 0x9000, scoped, tag = 'internal scratch']
  %s0 = inlined_call_operand.vmem [shape: f32[2,10,32], index: 0, kind: input, shape index: {}]
  %s1 = inlined_call_operand.vmem [shape: f32[4,32,8], index: 1, kind: input, shape index: {}]
  %s2 = inlined_call_operand.vmem [shape: f32[4,32,8], index: 2, kind: input, shape index: {}]
  %s3 = inlined_call_operand.vmem [shape: f32[4,32,8], index: 3, kind: input, shape index: {}]
  %s4 = inlined_call_operand.vmem [shape: f32[4,1,8], index: 4, kind: input, shape index: {}]
  %s5 = inlined_call_operand.vmem [shape: f32[4,1,8], index: 5, kind: input, shape index: {}]
  %s6 = inlined_call_operand.vmem [shape: f32[4,10,10], index: 6, kind: input, shape index: {}]
  %s7 = inlined_call_operand.vmem [shape: f32[4,8,32], index: 7, kind: input, shape index: {}]
  %s8 = inlined_call_operand.vmem [shape: f32[1,32], index: 8, kind: input, shape index: {}]
  %s9 = inlined_call_operand.vmem [shape: f32[2,10,32], index: 9, kind: output, shape index: {}]
  %s10 = sld [smem:[#allocation0]]
  $region69: #{tpu_custom_call.1} parent=0
    _
  %s12 = ssub.s32 1, %s10
  %s13 = scalar_select 0, %s12, %s10
  loop: start=0, step=1, limit=4
  $region2: #{tpu_custom_call.1} parent=0 // loop_pre_header
    _
  $region3: #{tpu_custom_call.1} parent=0 // loop_header
    %s15 = sphi 0, %s19
    %p16 = scmp.ge.s32.totalorder %s15, 4
    %s25 = sphi 0, %s27
    %s28 = sphi 0, %s25
    %s29 = sphi 0, %s28
    %s45 = sphi 0, %s29
    %s49 = sphi 0, %s49
    %s51 = sphi 0, %s49
    %s52 = sphi 0, %s51
    %s66 = sphi 0, %s52
    %s70 = sphi 0, %s70
    %s72 = sphi 0, %s70
    %s73 = sphi 0, %s72
    %s87 = sphi 0, %s73
    %s91 = sphi 0, %s91
    %s93 = sphi 0, %s91
    %s94 = sphi 0, %s93
    %s108 = sphi 0, %s94
    %s112 = sphi 0, %s112
    %s114 = sphi 0, %s112
    %s115 = sphi 0, %s114
    %s129 = sphi 0, %s115
    %s133 = sphi 0, %s133
    %s135 = sphi 0, %s133
    %s136 = sphi 0, %s135
    %s150 = sphi 0, %s136
    %s154 = sphi 0, %s154
    %s156 = sphi 0, %s154
    %s157 = sphi 0, %s156
    %s171 = sphi 0, %s157
    %s175 = sphi 0, %s175
    %s177 = sphi 0, %s175
    %s178 = sphi 0, %s177
    %s192 = sphi 0, %s178
    %s196 = sphi 0, %s196
    %s198 = sphi 0, %s196
    %s199 = sphi 0, %s198
    %s213 = sphi 0, %s199
    %s219 = sphi 0, %s221
    %s222 = sphi 0, %s219
    %s223 = sphi 0, %s222
    %s239 = sphi 0, %s223
  $region4: #{tpu_custom_call.1} parent=0 // loop_header_branch
    %18 = sbr.rel (%p16) target = $region8
  $region5: #{tpu_custom_call.1} parent=0 // loop_body
    %s20 = ssub.s32 %s15, 1
    %s21 = ssub.s32 %s15, 2
    %s22 = sadd.s32 %s15, 1
    %s23 = ssub.s32 %s15, %s22
    %p24 = scmp.eq.s32.totalorder %s23, 0
    %s26 = sadd.s32 %s25, 1
    %s27 = scalar_select %p24, %s25, %s26
    %p30 = pneg %p24
    %p31 = scmp.eq.s32.totalorder %s15, 1
    %p32 = por %p30, %p31
    %p33 = scmp.ne.s32.totalorder %s25, %s28
    %p34 = scmp.eq.s32.totalorder %s15, 0
    %p35 = por %p33, %p34
    %p36 = scmp.ne.s32.totalorder %s25, %s28
    %p37 = scmp.eq.s32.totalorder %s20, 1
    %p38 = por %p36, %p37
    %p39 = scmp.ne.s32.totalorder %s28, %s29
    %p40 = scmp.eq.s32.totalorder %s20, 0
    %p41 = por %p39, %p40
    %p42 = scmp.ne.s32.totalorder %s28, %s29
    %p43 = scmp.eq.s32.totalorder %s21, 1
    %p44 = por %p42, %p43
    %p46 = scmp.ne.s32.totalorder %s29, %s45
    %p47 = scmp.eq.s32.totalorder %s21, 0
    %p48 = por %p46, %p47
    %s50 = sadd.s32 %s49, 1
    %p53 = scmp.eq.s32.totalorder %s15, 1
    %p54 = scmp.ne.s32.totalorder %s49, %s51
    %p55 = scmp.eq.s32.totalorder %s15, 0
    %p56 = por %p54, %p55
    %p57 = scmp.ne.s32.totalorder %s49, %s51
    %p58 = scmp.eq.s32.totalorder %s20, 1
    %p59 = por %p57, %p58
    %p60 = scmp.ne.s32.totalorder %s51, %s52
    %p61 = scmp.eq.s32.totalorder %s20, 0
    %p62 = por %p60, %p61
    %p63 = scmp.ne.s32.totalorder %s51, %s52
    %p64 = scmp.eq.s32.totalorder %s21, 1
    %p65 = por %p63, %p64
    %p67 = scmp.ne.s32.totalorder %s52, %s66
    %p68 = scmp.eq.s32.totalorder %s21, 0
    %p69 = por %p67, %p68
    %s71 = sadd.s32 %s70, 1
    %p74 = scmp.eq.s32.totalorder %s15, 1
    %p75 = scmp.ne.s32.totalorder %s70, %s72
    %p76 = scmp.eq.s32.totalorder %s15, 0
    %p77 = por %p75, %p76
    %p78 = scmp.ne.s32.totalorder %s70, %s72
    %p79 = scmp.eq.s32.totalorder %s20, 1
    %p80 = por %p78, %p79
    %p81 = scmp.ne.s32.totalorder %s72, %s73
    %p82 = scmp.eq.s32.totalorder %s20, 0
    %p83 = por %p81, %p82
    %p84 = scmp.ne.s32.totalorder %s72, %s73
    %p85 = scmp.eq.s32.totalorder %s21, 1
    %p86 = por %p84, %p85
    %p88 = scmp.ne.s32.totalorder %s73, %s87
    %p89 = scmp.eq.s32.totalorder %s21, 0
    %p90 = por %p88, %p89
    %s92 = sadd.s32 %s91, 1
    %p95 = scmp.eq.s32.totalorder %s15, 1
    %p96 = scmp.ne.s32.totalorder %s91, %s93
    %p97 = scmp.eq.s32.totalorder %s15, 0
    %p98 = por %p96, %p97
    %p99 = scmp.ne.s32.totalorder %s91, %s93
    %p100 = scmp.eq.s32.totalorder %s20, 1
    %p101 = por %p99, %p100
    %p102 = scmp.ne.s32.totalorder %s93, %s94
    %p103 = scmp.eq.s32.totalorder %s20, 0
    %p104 = por %p102, %p103
    %p105 = scmp.ne.s32.totalorder %s93, %s94
    %p106 = scmp.eq.s32.totalorder %s21, 1
    %p107 = por %p105, %p106
    %p109 = scmp.ne.s32.totalorder %s94, %s108
    %p110 = scmp.eq.s32.totalorder %s21, 0
    %p111 = por %p109, %p110
    %s113 = sadd.s32 %s112, 1
    %p116 = scmp.eq.s32.totalorder %s15, 1
    %p117 = scmp.ne.s32.totalorder %s112, %s114
    %p118 = scmp.eq.s32.totalorder %s15, 0
    %p119 = por %p117, %p118
    %p120 = scmp.ne.s32.totalorder %s112, %s114
    %p121 = scmp.eq.s32.totalorder %s20, 1
    %p122 = por %p120, %p121
    %p123 = scmp.ne.s32.totalorder %s114, %s115
    %p124 = scmp.eq.s32.totalorder %s20, 0
    %p125 = por %p123, %p124
    %p126 = scmp.ne.s32.totalorder %s114, %s115
    %p127 = scmp.eq.s32.totalorder %s21, 1
    %p128 = por %p126, %p127
    %p130 = scmp.ne.s32.totalorder %s115, %s129
    %p131 = scmp.eq.s32.totalorder %s21, 0
    %p132 = por %p130, %p131
    %s134 = sadd.s32 %s133, 1
    %p137 = scmp.eq.s32.totalorder %s15, 1
    %p138 = scmp.ne.s32.totalorder %s133, %s135
    %p139 = scmp.eq.s32.totalorder %s15, 0
    %p140 = por %p138, %p139
    %p141 = scmp.ne.s32.totalorder %s133, %s135
    %p142 = scmp.eq.s32.totalorder %s20, 1
    %p143 = por %p141, %p142
    %p144 = scmp.ne.s32.totalorder %s135, %s136
    %p145 = scmp.eq.s32.totalorder %s20, 0
    %p146 = por %p144, %p145
    %p147 = scmp.ne.s32.totalorder %s135, %s136
    %p148 = scmp.eq.s32.totalorder %s21, 1
    %p149 = por %p147, %p148
    %p151 = scmp.ne.s32.totalorder %s136, %s150
    %p152 = scmp.eq.s32.totalorder %s21, 0
    %p153 = por %p151, %p152
    %s155 = sadd.s32 %s154, 1
    %p158 = scmp.eq.s32.totalorder %s15, 1
    %p159 = scmp.ne.s32.totalorder %s154, %s156
    %p160 = scmp.eq.s32.totalorder %s15, 0
    %p161 = por %p159, %p160
    %p162 = scmp.ne.s32.totalorder %s154, %s156
    %p163 = scmp.eq.s32.totalorder %s20, 1
    %p164 = por %p162, %p163
    %p165 = scmp.ne.s32.totalorder %s156, %s157
    %p166 = scmp.eq.s32.totalorder %s20, 0
    %p167 = por %p165, %p166
    %p168 = scmp.ne.s32.totalorder %s156, %s157
    %p169 = scmp.eq.s32.totalorder %s21, 1
    %p170 = por %p168, %p169
    %p172 = scmp.ne.s32.totalorder %s157, %s171
    %p173 = scmp.eq.s32.totalorder %s21, 0
    %p174 = por %p172, %p173
    %s176 = sadd.s32 %s175, 1
    %p179 = scmp.eq.s32.totalorder %s15, 1
    %p180 = scmp.ne.s32.totalorder %s175, %s177
    %p181 = scmp.eq.s32.totalorder %s15, 0
    %p182 = por %p180, %p181
    %p183 = scmp.ne.s32.totalorder %s175, %s177
    %p184 = scmp.eq.s32.totalorder %s20, 1
    %p185 = por %p183, %p184
    %p186 = scmp.ne.s32.totalorder %s177, %s178
    %p187 = scmp.eq.s32.totalorder %s20, 0
    %p188 = por %p186, %p187
    %p189 = scmp.ne.s32.totalorder %s177, %s178
    %p190 = scmp.eq.s32.totalorder %s21, 1
    %p191 = por %p189, %p190
    %p193 = scmp.ne.s32.totalorder %s178, %s192
    %p194 = scmp.eq.s32.totalorder %s21, 0
    %p195 = por %p193, %p194
    %s197 = sadd.s32 %s196, 1
    %p200 = scmp.eq.s32.totalorder %s15, 1
    %p201 = scmp.ne.s32.totalorder %s196, %s198
    %p202 = scmp.eq.s32.totalorder %s15, 0
    %p203 = por %p201, %p202
    %p204 = scmp.ne.s32.totalorder %s196, %s198
    %p205 = scmp.eq.s32.totalorder %s20, 1
    %p206 = por %p204, %p205
    %p207 = scmp.ne.s32.totalorder %s198, %s199
    %p208 = scmp.eq.s32.totalorder %s20, 0
    %p209 = por %p207, %p208
    %p210 = scmp.ne.s32.totalorder %s198, %s199
    %p211 = scmp.eq.s32.totalorder %s21, 1
    %p212 = por %p210, %p211
    %p214 = scmp.ne.s32.totalorder %s199, %s213
    %p215 = scmp.eq.s32.totalorder %s21, 0
    %p216 = por %p214, %p215
    %s217 = ssub.s32 %s15, %s22
    %p218 = scmp.eq.s32.totalorder %s217, 0
    %s220 = sadd.s32 %s219, 1
    %s221 = scalar_select %p218, %s219, %s220
    %p224 = pneg %p218
    %p225 = scmp.eq.s32.totalorder %s15, 1
    %p226 = por %p224, %p225
    %p227 = scmp.ne.s32.totalorder %s219, %s222
    %p228 = scmp.eq.s32.totalorder %s15, 0
    %p229 = por %p227, %p228
    %p230 = scmp.ne.s32.totalorder %s219, %s222
    %p231 = scmp.eq.s32.totalorder %s20, 1
    %p232 = por %p230, %p231
    %p233 = scmp.ne.s32.totalorder %s222, %s223
    %p234 = scmp.eq.s32.totalorder %s20, 0
    %p235 = por %p233, %p234
    %p236 = scmp.ne.s32.totalorder %s222, %s223
    %p237 = scmp.eq.s32.totalorder %s21, 1
    %p238 = por %p236, %p237
    %p240 = scmp.ne.s32.totalorder %s223, %s239
    %p241 = scmp.eq.s32.totalorder %s21, 0
    %p242 = por %p240, %p241
    %p243 = scmp.le.s32.totalorder 1, %s15
    %p244 = scmp.lt.s32.totalorder %s15, 3
    %p245 = pnand %p243, %p244
    %p246 = pneg %p245
    // Predicated region
    $region9: #{tpu_custom_call.1} parent=5 // pred_check
      _
    $region10: #{tpu_custom_call.1} parent=5 // pred_check_branch
      %248 = sbr.rel (%p245) target = $region12
    $region11: #{tpu_custom_call.1} parent=5 // pred_region
      %s249 = ssub.s32 %s15, 1
      // Predicated region
      $region13: #{tpu_custom_call.1} parent=11 // pred_check
        %p250 = pneg %p62
      $region14: #{tpu_custom_call.1} parent=11 // pred_check_branch
        %252 = sbr.rel (%p250) target = $region16
      $region15: #{tpu_custom_call.1} parent=11 // pred_region
        _
      $region16: #{tpu_custom_call.1} parent=11 // pred_fallthru
        _
      // Predicated region
      $region17: #{tpu_custom_call.1} parent=11 // pred_check
        %p253 = pneg %p83
      $region18: #{tpu_custom_call.1} parent=11 // pred_check_branch
        %255 = sbr.rel (%p253) target = $region20
      $region19: #{tpu_custom_call.1} parent=11 // pred_region
        _
      $region20: #{tpu_custom_call.1} parent=11 // pred_fallthru
        _
      // Predicated region
      $region21: #{tpu_custom_call.1} parent=11 // pred_check
        %p256 = pneg %p104
      $region22: #{tpu_custom_call.1} parent=11 // pred_check_branch
        %258 = sbr.rel (%p256) target = $region24
      $region23: #{tpu_custom_call.1} parent=11 // pred_region
        _
      $region24: #{tpu_custom_call.1} parent=11 // pred_fallthru
        _
      // Predicated region
      $region25: #{tpu_custom_call.1} parent=11 // pred_check
        %p259 = pneg %p125
      $region26: #{tpu_custom_call.1} parent=11 // pred_check_branch
        %261 = sbr.rel (%p259) target = $region28
      $region27: #{tpu_custom_call.1} parent=11 // pred_region
        _
      $region28: #{tpu_custom_call.1} parent=11 // pred_fallthru
        _
      // Predicated region
      $region29: #{tpu_custom_call.1} parent=11 // pred_check
        %p262 = pneg %p146
      $region30: #{tpu_custom_call.1} parent=11 // pred_check_branch
        %264 = sbr.rel (%p262) target = $region32
      $region31: #{tpu_custom_call.1} parent=11 // pred_region
        _
      $region32: #{tpu_custom_call.1} parent=11 // pred_fallthru
        _
      // Predicated region
      $region33: #{tpu_custom_call.1} parent=11 // pred_check
        %p265 = pneg %p167
      $region34: #{tpu_custom_call.1} parent=11 // pred_check_branch
        %267 = sbr.rel (%p265) target = $region36
      $region35: #{tpu_custom_call.1} parent=11 // pred_region
        _
      $region36: #{tpu_custom_call.1} parent=11 // pred_fallthru
        _
      // Predicated region
      $region37: #{tpu_custom_call.1} parent=11 // pred_check
        %p268 = pneg %p188
      $region38: #{tpu_custom_call.1} parent=11 // pred_check_branch
        %270 = sbr.rel (%p268) target = $region40
      $region39: #{tpu_custom_call.1} parent=11 // pred_region
        _
      $region40: #{tpu_custom_call.1} parent=11 // pred_fallthru
        _
      // Predicated region
      $region41: #{tpu_custom_call.1} parent=11 // pred_check
        %p271 = pneg %p209
      $region42: #{tpu_custom_call.1} parent=11 // pred_check_branch
        %273 = sbr.rel (%p271) target = $region44
      $region43: #{tpu_custom_call.1} parent=11 // pred_region
        _
      $region44: #{tpu_custom_call.1} parent=11 // pred_fallthru
        _
    $region12: #{tpu_custom_call.1} parent=5 // pred_fallthru
      _
    %p274 = scmp.lt.s32.totalorder %s15, 2
    // Predicated region
    $region45: #{tpu_custom_call.1} parent=5 // pred_check
      %p275 = pneg %p274
    $region46: #{tpu_custom_call.1} parent=5 // pred_check_branch
      %277 = sbr.rel (%p275) target = $region48
    $region47: #{tpu_custom_call.1} parent=5 // pred_region
      // Predicated region
      $region49: #{tpu_custom_call.1} parent=47 // pred_check
        %p278 = pneg %p35
      $region50: #{tpu_custom_call.1} parent=47 // pred_check_branch
        %280 = sbr.rel (%p278) target = $region52
      $region51: #{tpu_custom_call.1} parent=47 // pred_region
        %p281 = scmp.lt.s32.totalorder %s15, 1
        %s282 = scalar_select %p281, %s15, 1
        %s283 = smul.addr %s282, 2
        %s284 = smul.addr %s283, 8
        %s285 = scalar_lea.vmem %s0, %s284
      $region52: #{tpu_custom_call.1} parent=47 // pred_fallthru
        _
    $region48: #{tpu_custom_call.1} parent=5 // pred_fallthru
      _
    %p286 = scmp.le.s32.totalorder 1, %s15
    %p287 = scmp.lt.s32.totalorder %s15, 3
    %p288 = pnand %p286, %p287
    %p289 = pneg %p288
    // Predicated region
    $region53: #{tpu_custom_call.1} parent=5 // pred_check
      _
    $region54: #{tpu_custom_call.1} parent=5 // pred_check_branch
      %291 = sbr.rel (%p288) target = $region56
    $region55: #{tpu_custom_call.1} parent=5 // pred_region
      %s292 = ssub.s32 %s15, 1
      %p293 = scmp.lt.s32.totalorder %s20, 1
      %s294 = scalar_select %p293, %s20, 1
      %s295 = smul.addr %s294, 2
      %s296 = smul.addr %s295, 8
      %s297 = scalar_lea.vmem %s0, %s296
      %p298 = pneg %p41
      %p299 = pneg %p38
      %p300 = pneg %p62
      %p301 = pneg %p59
      %p302 = pneg %p83
      %p303 = pneg %p80
      %p304 = pneg %p104
      %p305 = pneg %p101
      %p306 = pneg %p125
      %p307 = pneg %p122
      %p308 = pneg %p146
      %p309 = pneg %p143
      %p310 = pneg %p167
      %p311 = pneg %p164
      %p312 = pneg %p188
      %p313 = pneg %p185
      %p314 = pneg %p209
      %p315 = pneg %p206
      %p316 = pneg %p235
      %p317 = pneg %p232
      %p318 = scmp.lt.s32.totalorder %s20, 1
      %s319 = scalar_select %p318, %s20, 1
      %s320 = smul.addr %s319, 2
      %s321 = smul.addr %s320, 8
      %s322 = scalar_lea.vmem %s9, %s321
      %p323 = scmp.lt.s32.totalorder %s20, 1
      %s324 = scalar_select %p323, %s20, 1
      %s325 = smul.addr %s324, 2
      %s326 = smul.addr %s325, 8
      %s327 = scalar_lea.vmem %s0, %s326
      %p328 = scmp.lt.s32.totalorder %s20, 1
      %s329 = scalar_select %p328, %s20, 1
      %s330 = smul.addr %s329, 2
      %s331 = smul.addr %s330, 8
      %s332 = scalar_lea.vmem %s9, %s331
      %v333 = vld [vmem:[%s327] sm:$0xff]
      %v334 = vld [vmem:[%s327 + $0x8] sm:$0x3]
      %v335 = vld [vmem:[%s8] sm:$0x1]
      %v336 = vld [vmem:[%s1] sm:$0xff]
      %v337 = vld [vmem:[%s1 + $0x8] sm:$0xff]
      %v338 = vld [vmem:[%s1 + $0x10] sm:$0xff]
      %v339 = vld [vmem:[%s1 + $0x18] sm:$0xff]
      %v340 = vld [vmem:[%s4] sm:$0x1]
      %v342 = vperm.slane %v340, 0
      %vm344 = vcmask 261120
      %v346 = vsel %vm344, %v333, 0
      %v349 = vsel %vm344, %v334, 0
      %351 = vmatpush.msra.mxu0 0.0
      %352 = vmatpush.msra.mxu0 0.0
      %353 = vmatpush.msra.mxu0 0.0
      %354 = vmatpush.msra.mxu0 0.0
      %355 = vmatpush.msra.mxu0 0.0
      %356 = vmatpush.msra.mxu0 0.0
      %357 = vmatpush.msra.mxu0 0.0
      %358 = vmatpush.msra.mxu0 0.0
      %359 = vmatpush.msra.mxu0 0.0
      %360 = vmatpush.msra.mxu0 0.0
      %361 = vmatpush.msra.mxu0 0.0
      %362 = vmatpush.msra.mxu0 0.0
      %363 = vmatpush.msra.mxu0 %v339
      %364 = vmatpush.msra.mxu0 %v338
      %365 = vmatpush.msra.mxu0 %v337
      %366 = vmatpush.msra.mxu0 %v336
      %367 = vmatmul.f32.gmra.mxu0 %v346
      %v368 = vpop.f32.mrf.mxu0
      %v369 = vadd.f32 %v342, %v368
      %370 = vmatmul.f32.gmra.mxu0 %v349
      %v371 = vpop.f32.mrf.mxu0
      %v372 = vadd.f32 %v342, %v371
      %373 = vdwg.mxu0
      %v374 = vld [vmem:[%s2] sm:$0xff]
      %v375 = vld [vmem:[%s2 + $0x8] sm:$0xff]
      %v376 = vld [vmem:[%s2 + $0x10] sm:$0xff]
      %v377 = vld [vmem:[%s2 + $0x18] sm:$0xff]
      %378 = vmatpush.msra.mxu0 0.0
      %379 = vmatpush.msra.mxu0 0.0
      %380 = vmatpush.msra.mxu0 0.0
      %381 = vmatpush.msra.mxu0 0.0
      %382 = vmatpush.msra.mxu0 0.0
      %383 = vmatpush.msra.mxu0 0.0
      %384 = vmatpush.msra.mxu0 0.0
      %385 = vmatpush.msra.mxu0 0.0
      %386 = vmatpush.msra.mxu0 0.0
      %387 = vmatpush.msra.mxu0 0.0
      %388 = vmatpush.msra.mxu0 0.0
      %389 = vmatpush.msra.mxu0 0.0
      %390 = vmatpush.msra.mxu0 %v377
      %391 = vmatpush.msra.mxu0 %v376
      %392 = vmatpush.msra.mxu0 %v375
      %393 = vmatpush.msra.mxu0 %v374
      %394 = vmatmul.f32.gmra.mxu0 %v346
      %v395 = vpop.f32.mrf.mxu0
      %v396 = vadd.f32 0.0, %v395
      %397 = vmatmul.f32.gmra.mxu0 %v349
      %v398 = vpop.f32.mrf.mxu0
      %v399 = vadd.f32 0.0, %v398
      %400 = vdwg.mxu0
      %v401 = vld [vmem:[%s3] sm:$0xff]
      %v402 = vld [vmem:[%s3 + $0x8] sm:$0xff]
      %v403 = vld [vmem:[%s3 + $0x10] sm:$0xff]
      %v404 = vld [vmem:[%s3 + $0x18] sm:$0xff]
      %v405 = vld [vmem:[%s5] sm:$0x1]
      %v407 = vperm.slane %v405, 0
      %409 = vmatpush.msra.mxu0 0.0
      %410 = vmatpush.msra.mxu0 0.0
      %411 = vmatpush.msra.mxu0 0.0
      %412 = vmatpush.msra.mxu0 0.0
      %413 = vmatpush.msra.mxu0 0.0
      %414 = vmatpush.msra.mxu0 0.0
      %415 = vmatpush.msra.mxu0 0.0
      %416 = vmatpush.msra.mxu0 0.0
      %417 = vmatpush.msra.mxu0 0.0
      %418 = vmatpush.msra.mxu0 0.0
      %419 = vmatpush.msra.mxu0 0.0
      %420 = vmatpush.msra.mxu0 0.0
      %421 = vmatpush.msra.mxu0 %v404
      %422 = vmatpush.msra.mxu0 %v403
      %423 = vmatpush.msra.mxu0 %v402
      %424 = vmatpush.msra.mxu0 %v401
      %425 = vmatmul.f32.gmra.mxu0 %v346
      %v426 = vpop.f32.mrf.mxu0
      %v427 = vadd.f32 %v407, %v426
      %428 = vmatmul.f32.gmra.mxu0 %v349
      %v429 = vpop.f32.mrf.mxu0
      %v430 = vadd.f32 %v407, %v429
      %431 = vdwg.mxu0
      %v432 = vld [vmem:[%s6] sm:$0xff]
      %v433 = vld [vmem:[%s6 + $0x8] sm:$0x3]
      %vm434 = vcmask 64512
      %v436 = vsel %vm434, %v369, 0
      %v439 = vsel %vm434, %v372, 0
      %v442 = vsel %vm434, %v396, 0
      %v445 = vsel %vm434, %v399, 0
      %447 = vmatpush.xpose.msra.mxu0 0.0
      %448 = vmatpush.xpose.msra.mxu0 0.0
      %449 = vmatpush.xpose.msra.mxu0 0.0
      %450 = vmatpush.xpose.msra.mxu0 0.0
      %451 = vmatpush.xpose.msra.mxu0 0.0
      %452 = vmatpush.xpose.msra.mxu0 0.0
      %453 = vmatpush.xpose.msra.mxu0 0.0
      %454 = vmatpush.xpose.msra.mxu0 0.0
      %455 = vmatpush.xpose.msra.mxu0 0.0
      %456 = vmatpush.xpose.msra.mxu0 0.0
      %457 = vmatpush.xpose.msra.mxu0 0.0
      %458 = vmatpush.xpose.msra.mxu0 0.0
      %459 = vmatpush.xpose.msra.mxu0 0.0
      %460 = vmatpush.xpose.msra.mxu0 0.0
      %461 = vmatpush.xpose.msra.mxu0 %v445
      %462 = vmatpush.xpose.msra.mxu0 %v442
      %463 = vmatmul.f32.gmra.mxu0 %v436
      %v464 = vpop.f32.mrf.mxu0
      %v465 = vadd.f32 %v432, %v464
      %466 = vmatmul.f32.gmra.mxu0 %v439
      %v467 = vpop.f32.mrf.mxu0
      %v468 = vadd.f32 %v433, %v467
      %469 = vdwg.mxu0
      %vm470 = vcmask 80896
      %v471 = vsel %vm470, %v465, -inf
      %472 = vmax.xlane.f32.xlu0 %v471
      %v473 = vpop.xlane.xlu0 %472
      %vm474 = vcmask 74752
      %v475 = vsel %vm474, %v468, -inf
      %476 = vmax.xlane.f32.xlu0 %v475
      %v477 = vpop.xlane.xlu0 %476
      %v478 = vsub.f32 %v465, %v473
      %v479 = vsub.f32 %v468, %v477
      %v480 = vmul.f32 %v478, 1.442695
      %v481 = vpow.pop %v480
      %v482 = vmul.f32 %v479, 1.442695
      %v483 = vpow.pop %v482
      %v484 = vsel %vm470, %v481, 0.0
      %485 = vadd.xlane.f32.xlu0 %v484
      %v486 = vpop.xlane.xlu0 %485
      %v487 = vsel %vm474, %v483, 0.0
      %488 = vadd.xlane.f32.xlu0 %v487
      %v489 = vpop.xlane.xlu0 %488
      %v490 = vrcp.pop %v486
      %v491 = vrcp.pop %v489
      %v492 = vmul.f32 %v481, %v490
      %v493 = vmul.f32 %v483, %v491
      %v495 = vsel %vm470, %v492, 0
      %v498 = vsel %vm470, %v493, 0
      %vm500 = vcmask 1041408
      %v502 = vsel %vm500, %v430, 0
      %504 = vmatpush.msra.mxu0 0.0
      %505 = vmatpush.msra.mxu0 0.0
      %506 = vmatpush.msra.mxu0 0.0
      %507 = vmatpush.msra.mxu0 0.0
      %508 = vmatpush.msra.mxu0 0.0
      %509 = vmatpush.msra.mxu0 0.0
      %510 = vmatpush.msra.mxu0 0.0
      %511 = vmatpush.msra.mxu0 0.0
      %512 = vmatpush.msra.mxu0 0.0
      %513 = vmatpush.msra.mxu0 0.0
      %514 = vmatpush.msra.mxu0 0.0
      %515 = vmatpush.msra.mxu0 0.0
      %516 = vmatpush.msra.mxu0 0.0
      %517 = vmatpush.msra.mxu0 0.0
      %518 = vmatpush.msra.mxu0 %v502
      %519 = vmatpush.msra.mxu0 %v427
      %520 = vmatmul.f32.gmra.mxu0 %v495
      %v521 = vpop.f32.mrf.mxu0
      %v522 = vadd.f32 0.0, %v521
      %523 = vmatmul.f32.gmra.mxu0 %v498
      %v524 = vpop.f32.mrf.mxu0
      %v525 = vadd.f32 0.0, %v524
      %526 = vdwg.mxu0
      %v527 = vld [vmem:[%s7] sm:$0xff]
      %v529 = vsel %vm434, %v522, 0
      %v532 = vsel %vm434, %v525, 0
      %534 = vmatpush.msra.mxu0 0.0
      %535 = vmatpush.msra.mxu0 0.0
      %536 = vmatpush.msra.mxu0 0.0
      %537 = vmatpush.msra.mxu0 0.0
      %538 = vmatpush.msra.mxu0 0.0
      %539 = vmatpush.msra.mxu0 0.0
      %540 = vmatpush.msra.mxu0 0.0
      %541 = vmatpush.msra.mxu0 0.0
      %542 = vmatpush.msra.mxu0 0.0
      %543 = vmatpush.msra.mxu0 0.0
      %544 = vmatpush.msra.mxu0 0.0
      %545 = vmatpush.msra.mxu0 0.0
      %546 = vmatpush.msra.mxu0 0.0
      %547 = vmatpush.msra.mxu0 0.0
      %548 = vmatpush.msra.mxu0 0.0
      %549 = vmatpush.msra.mxu0 %v527
      %550 = vmatmul.f32.gmra.mxu0 %v529
      %v551 = vpop.f32.mrf.mxu0
      %v552 = vadd.f32 0.0, %v551
      %553 = vmatmul.f32.gmra.mxu0 %v532
      %v554 = vpop.f32.mrf.mxu0
      %v555 = vadd.f32 0.0, %v554
      %556 = vdwg.mxu0
      %v558 = vperm.slane %v335, 0
      %v560 = vadd.f32 %v558, %v552
      %v561 = vadd.f32 %v558, %v555
      %s562 = scalar_lea.vmem %s1, 32
      %v563 = vld [vmem:[%s562] sm:$0xff]
      %v564 = vld [vmem:[%s562 + $0x8] sm:$0xff]
      %v565 = vld [vmem:[%s562 + $0x10] sm:$0xff]
      %v566 = vld [vmem:[%s562 + $0x18] sm:$0xff]
      %s567 = scalar_lea.vmem %s4, 1
      %v568 = vld [vmem:[%s567] sm:$0x1]
      %v570 = vperm.slane %v568, 0
      %572 = vmatpush.msra.mxu0 0.0
      %573 = vmatpush.msra.mxu0 0.0
      %574 = vmatpush.msra.mxu0 0.0
      %575 = vmatpush.msra.mxu0 0.0
      %576 = vmatpush.msra.mxu0 0.0
      %577 = vmatpush.msra.mxu0 0.0
      %578 = vmatpush.msra.mxu0 0.0
      %579 = vmatpush.msra.mxu0 0.0
      %580 = vmatpush.msra.mxu0 0.0
      %581 = vmatpush.msra.mxu0 0.0
      %582 = vmatpush.msra.mxu0 0.0
      %583 = vmatpush.msra.mxu0 0.0
      %584 = vmatpush.msra.mxu0 %v566
      %585 = vmatpush.msra.mxu0 %v565
      %586 = vmatpush.msra.mxu0 %v564
      %587 = vmatpush.msra.mxu0 %v563
      %588 = vmatmul.f32.gmra.mxu0 %v346
      %v589 = vpop.f32.mrf.mxu0
      %v590 = vadd.f32 %v570, %v589
      %591 = vmatmul.f32.gmra.mxu0 %v349
      %v592 = vpop.f32.mrf.mxu0
      %v593 = vadd.f32 %v570, %v592
      %594 = vdwg.mxu0
      %s595 = scalar_lea.vmem %s2, 32
      %v596 = vld [vmem:[%s595] sm:$0xff]
      %v597 = vld [vmem:[%s595 + $0x8] sm:$0xff]
      %v598 = vld [vmem:[%s595 + $0x10] sm:$0xff]
      %v599 = vld [vmem:[%s595 + $0x18] sm:$0xff]
      %600 = vmatpush.msra.mxu0 0.0
      %601 = vmatpush.msra.mxu0 0.0
      %602 = vmatpush.msra.mxu0 0.0
      %603 = vmatpush.msra.mxu0 0.0
      %604 = vmatpush.msra.mxu0 0.0
      %605 = vmatpush.msra.mxu0 0.0
      %606 = vmatpush.msra.mxu0 0.0
      %607 = vmatpush.msra.mxu0 0.0
      %608 = vmatpush.msra.mxu0 0.0
      %609 = vmatpush.msra.mxu0 0.0
      %610 = vmatpush.msra.mxu0 0.0
      %611 = vmatpush.msra.mxu0 0.0
      %612 = vmatpush.msra.mxu0 %v599
      %613 = vmatpush.msra.mxu0 %v598
      %614 = vmatpush.msra.mxu0 %v597
      %615 = vmatpush.msra.mxu0 %v596
      %616 = vmatmul.f32.gmra.mxu0 %v346
      %v617 = vpop.f32.mrf.mxu0
      %v618 = vadd.f32 0.0, %v617
      %619 = vmatmul.f32.gmra.mxu0 %v349
      %v620 = vpop.f32.mrf.mxu0
      %v621 = vadd.f32 0.0, %v620
      %622 = vdwg.mxu0
      %s623 = scalar_lea.vmem %s3, 32
      %v624 = vld [vmem:[%s623] sm:$0xff]
      %v625 = vld [vmem:[%s623 + $0x8] sm:$0xff]
      %v626 = vld [vmem:[%s623 + $0x10] sm:$0xff]
      %v627 = vld [vmem:[%s623 + $0x18] sm:$0xff]
      %s628 = scalar_lea.vmem %s5, 1
      %v629 = vld [vmem:[%s628] sm:$0x1]
      %v631 = vperm.slane %v629, 0
      %633 = vmatpush.msra.mxu0 0.0
      %634 = vmatpush.msra.mxu0 0.0
      %635 = vmatpush.msra.mxu0 0.0
      %636 = vmatpush.msra.mxu0 0.0
      %637 = vmatpush.msra.mxu0 0.0
      %638 = vmatpush.msra.mxu0 0.0
      %639 = vmatpush.msra.mxu0 0.0
      %640 = vmatpush.msra.mxu0 0.0
      %641 = vmatpush.msra.mxu0 0.0
      %642 = vmatpush.msra.mxu0 0.0
      %643 = vmatpush.msra.mxu0 0.0
      %644 = vmatpush.msra.mxu0 0.0
      %645 = vmatpush.msra.mxu0 %v627
      %646 = vmatpush.msra.mxu0 %v626
      %647 = vmatpush.msra.mxu0 %v625
      %648 = vmatpush.msra.mxu0 %v624
      %649 = vmatmul.f32.gmra.mxu0 %v346
      %v650 = vpop.f32.mrf.mxu0
      %v651 = vadd.f32 %v631, %v650
      %652 = vmatmul.f32.gmra.mxu0 %v349
      %v653 = vpop.f32.mrf.mxu0
      %v654 = vadd.f32 %v631, %v653
      %655 = vdwg.mxu0
      %s656 = scalar_lea.vmem %s6, 16
      %v657 = vld [vmem:[%s656] sm:$0xff]
      %v658 = vld [vmem:[%s656 + $0x8] sm:$0x3]
      %v660 = vsel %vm434, %v590, 0
      %v663 = vsel %vm434, %v593, 0
      %v666 = vsel %vm434, %v618, 0
      %v669 = vsel %vm434, %v621, 0
      %671 = vmatpush.xpose.msra.mxu0 0.0
      %672 = vmatpush.xpose.msra.mxu0 0.0
      %673 = vmatpush.xpose.msra.mxu0 0.0
      %674 = vmatpush.xpose.msra.mxu0 0.0
      %675 = vmatpush.xpose.msra.mxu0 0.0
      %676 = vmatpush.xpose.msra.mxu0 0.0
      %677 = vmatpush.xpose.msra.mxu0 0.0
      %678 = vmatpush.xpose.msra.mxu0 0.0
      %679 = vmatpush.xpose.msra.mxu0 0.0
      %680 = vmatpush.xpose.msra.mxu0 0.0
      %681 = vmatpush.xpose.msra.mxu0 0.0
      %682 = vmatpush.xpose.msra.mxu0 0.0
      %683 = vmatpush.xpose.msra.mxu0 0.0
      %684 = vmatpush.xpose.msra.mxu0 0.0
      %685 = vmatpush.xpose.msra.mxu0 %v669
      %686 = vmatpush.xpose.msra.mxu0 %v666
      %687 = vmatmul.f32.gmra.mxu0 %v660
      %v688 = vpop.f32.mrf.mxu0
      %v689 = vadd.f32 %v657, %v688
      %690 = vmatmul.f32.gmra.mxu0 %v663
      %v691 = vpop.f32.mrf.mxu0
      %v692 = vadd.f32 %v658, %v691
      %693 = vdwg.mxu0
      %v694 = vsel %vm470, %v689, -inf
      %695 = vmax.xlane.f32.xlu0 %v694
      %v696 = vpop.xlane.xlu0 %695
      %v697 = vsel %vm474, %v692, -inf
      %698 = vmax.xlane.f32.xlu0 %v697
      %v699 = vpop.xlane.xlu0 %698
      %v700 = vsub.f32 %v689, %v696
      %v701 = vsub.f32 %v692, %v699
      %v702 = vmul.f32 %v700, 1.442695
      %v703 = vpow.pop %v702
      %v704 = vmul.f32 %v701, 1.442695
      %v705 = vpow.pop %v704
      %v706 = vsel %vm470, %v703, 0.0
      %707 = vadd.xlane.f32.xlu0 %v706
      %v708 = vpop.xlane.xlu0 %707
      %v709 = vsel %vm474, %v705, 0.0
      %710 = vadd.xlane.f32.xlu0 %v709
      %v711 = vpop.xlane.xlu0 %710
      %v712 = vrcp.pop %v708
      %v713 = vrcp.pop %v711
      %v714 = vmul.f32 %v703, %v712
      %v715 = vmul.f32 %v705, %v713
      %v717 = vsel %vm470, %v714, 0
      %v720 = vsel %vm470, %v715, 0
      %v723 = vsel %vm500, %v654, 0
      %725 = vmatpush.msra.mxu0 0.0
      %726 = vmatpush.msra.mxu0 0.0
      %727 = vmatpush.msra.mxu0 0.0
      %728 = vmatpush.msra.mxu0 0.0
      %729 = vmatpush.msra.mxu0 0.0
      %730 = vmatpush.msra.mxu0 0.0
      %731 = vmatpush.msra.mxu0 0.0
      %732 = vmatpush.msra.mxu0 0.0
      %733 = vmatpush.msra.mxu0 0.0
      %734 = vmatpush.msra.mxu0 0.0
      %735 = vmatpush.msra.mxu0 0.0
      %736 = vmatpush.msra.mxu0 0.0
      %737 = vmatpush.msra.mxu0 0.0
      %738 = vmatpush.msra.mxu0 0.0
      %739 = vmatpush.msra.mxu0 %v723
      %740 = vmatpush.msra.mxu0 %v651
      %741 = vmatmul.f32.gmra.mxu0 %v717
      %v742 = vpop.f32.mrf.mxu0
      %v743 = vadd.f32 0.0, %v742
      %744 = vmatmul.f32.gmra.mxu0 %v720
      %v745 = vpop.f32.mrf.mxu0
      %v746 = vadd.f32 0.0, %v745
      %747 = vdwg.mxu0
      %s748 = scalar_lea.vmem %s7, 8
      %v749 = vld [vmem:[%s748] sm:$0xff]
      %v751 = vsel %vm434, %v743, 0
      %v754 = vsel %vm434, %v746, 0
      %756 = vmatpush.msra.mxu0 0.0
      %757 = vmatpush.msra.mxu0 0.0
      %758 = vmatpush.msra.mxu0 0.0
      %759 = vmatpush.msra.mxu0 0.0
      %760 = vmatpush.msra.mxu0 0.0
      %761 = vmatpush.msra.mxu0 0.0
      %762 = vmatpush.msra.mxu0 0.0
      %763 = vmatpush.msra.mxu0 0.0
      %764 = vmatpush.msra.mxu0 0.0
      %765 = vmatpush.msra.mxu0 0.0
      %766 = vmatpush.msra.mxu0 0.0
      %767 = vmatpush.msra.mxu0 0.0
      %768 = vmatpush.msra.mxu0 0.0
      %769 = vmatpush.msra.mxu0 0.0
      %770 = vmatpush.msra.mxu0 0.0
      %771 = vmatpush.msra.mxu0 %v749
      %772 = vmatmul.f32.gmra.mxu0 %v751
      %v773 = vpop.f32.mrf.mxu0
      %v774 = vadd.f32 0.0, %v773
      %775 = vmatmul.f32.gmra.mxu0 %v754
      %v776 = vpop.f32.mrf.mxu0
      %v777 = vadd.f32 0.0, %v776
      %778 = vdwg.mxu0
      %v779 = vadd.f32 %v560, %v774
      %v780 = vadd.f32 %v561, %v777
      %s781 = scalar_lea.vmem %s1, 64
      %v782 = vld [vmem:[%s781] sm:$0xff]
      %v783 = vld [vmem:[%s781 + $0x8] sm:$0xff]
      %v784 = vld [vmem:[%s781 + $0x10] sm:$0xff]
      %v785 = vld [vmem:[%s781 + $0x18] sm:$0xff]
      %s786 = scalar_lea.vmem %s4, 2
      %v787 = vld [vmem:[%s786] sm:$0x1]
      %v789 = vperm.slane %v787, 0
      %791 = vmatpush.msra.mxu0 0.0
      %792 = vmatpush.msra.mxu0 0.0
      %793 = vmatpush.msra.mxu0 0.0
      %794 = vmatpush.msra.mxu0 0.0
      %795 = vmatpush.msra.mxu0 0.0
      %796 = vmatpush.msra.mxu0 0.0
      %797 = vmatpush.msra.mxu0 0.0
      %798 = vmatpush.msra.mxu0 0.0
      %799 = vmatpush.msra.mxu0 0.0
      %800 = vmatpush.msra.mxu0 0.0
      %801 = vmatpush.msra.mxu0 0.0
      %802 = vmatpush.msra.mxu0 0.0
      %803 = vmatpush.msra.mxu0 %v785
      %804 = vmatpush.msra.mxu0 %v784
      %805 = vmatpush.msra.mxu0 %v783
      %806 = vmatpush.msra.mxu0 %v782
      %807 = vmatmul.f32.gmra.mxu0 %v346
      %v808 = vpop.f32.mrf.mxu0
      %v809 = vadd.f32 %v789, %v808
      %810 = vmatmul.f32.gmra.mxu0 %v349
      %v811 = vpop.f32.mrf.mxu0
      %v812 = vadd.f32 %v789, %v811
      %813 = vdwg.mxu0
      %s814 = scalar_lea.vmem %s2, 64
      %v815 = vld [vmem:[%s814] sm:$0xff]
      %v816 = vld [vmem:[%s814 + $0x8] sm:$0xff]
      %v817 = vld [vmem:[%s814 + $0x10] sm:$0xff]
      %v818 = vld [vmem:[%s814 + $0x18] sm:$0xff]
      %819 = vmatpush.msra.mxu0 0.0
      %820 = vmatpush.msra.mxu0 0.0
      %821 = vmatpush.msra.mxu0 0.0
      %822 = vmatpush.msra.mxu0 0.0
      %823 = vmatpush.msra.mxu0 0.0
      %824 = vmatpush.msra.mxu0 0.0
      %825 = vmatpush.msra.mxu0 0.0
      %826 = vmatpush.msra.mxu0 0.0
      %827 = vmatpush.msra.mxu0 0.0
      %828 = vmatpush.msra.mxu0 0.0
      %829 = vmatpush.msra.mxu0 0.0
      %830 = vmatpush.msra.mxu0 0.0
      %831 = vmatpush.msra.mxu0 %v818
      %832 = vmatpush.msra.mxu0 %v817
      %833 = vmatpush.msra.mxu0 %v816
      %834 = vmatpush.msra.mxu0 %v815
      %835 = vmatmul.f32.gmra.mxu0 %v346
      %v836 = vpop.f32.mrf.mxu0
      %v837 = vadd.f32 0.0, %v836
      %838 = vmatmul.f32.gmra.mxu0 %v349
      %v839 = vpop.f32.mrf.mxu0
      %v840 = vadd.f32 0.0, %v839
      %841 = vdwg.mxu0
      %s842 = scalar_lea.vmem %s3, 64
      %v843 = vld [vmem:[%s842] sm:$0xff]
      %v844 = vld [vmem:[%s842 + $0x8] sm:$0xff]
      %v845 = vld [vmem:[%s842 + $0x10] sm:$0xff]
      %v846 = vld [vmem:[%s842 + $0x18] sm:$0xff]
      %s847 = scalar_lea.vmem %s5, 2
      %v848 = vld [vmem:[%s847] sm:$0x1]
      %v850 = vperm.slane %v848, 0
      %852 = vmatpush.msra.mxu0 0.0
      %853 = vmatpush.msra.mxu0 0.0
      %854 = vmatpush.msra.mxu0 0.0
      %855 = vmatpush.msra.mxu0 0.0
      %856 = vmatpush.msra.mxu0 0.0
      %857 = vmatpush.msra.mxu0 0.0
      %858 = vmatpush.msra.mxu0 0.0
      %859 = vmatpush.msra.mxu0 0.0
      %860 = vmatpush.msra.mxu0 0.0
      %861 = vmatpush.msra.mxu0 0.0
      %862 = vmatpush.msra.mxu0 0.0
      %863 = vmatpush.msra.mxu0 0.0
      %864 = vmatpush.msra.mxu0 %v846
      %865 = vmatpush.msra.mxu0 %v845
      %866 = vmatpush.msra.mxu0 %v844
      %867 = vmatpush.msra.mxu0 %v843
      %868 = vmatmul.f32.gmra.mxu0 %v346
      %v869 = vpop.f32.mrf.mxu0
      %v870 = vadd.f32 %v850, %v869
      %871 = vmatmul.f32.gmra.mxu0 %v349
      %v872 = vpop.f32.mrf.mxu0
      %v873 = vadd.f32 %v850, %v872
      %874 = vdwg.mxu0
      %s875 = scalar_lea.vmem %s6, 32
      %v876 = vld [vmem:[%s875] sm:$0xff]
      %v877 = vld [vmem:[%s875 + $0x8] sm:$0x3]
      %v879 = vsel %vm434, %v809, 0
      %v882 = vsel %vm434, %v812, 0
      %v885 = vsel %vm434, %v837, 0
      %v888 = vsel %vm434, %v840, 0
      %890 = vmatpush.xpose.msra.mxu0 0.0
      %891 = vmatpush.xpose.msra.mxu0 0.0
      %892 = vmatpush.xpose.msra.mxu0 0.0
      %893 = vmatpush.xpose.msra.mxu0 0.0
      %894 = vmatpush.xpose.msra.mxu0 0.0
      %895 = vmatpush.xpose.msra.mxu0 0.0
      %896 = vmatpush.xpose.msra.mxu0 0.0
      %897 = vmatpush.xpose.msra.mxu0 0.0
      %898 = vmatpush.xpose.msra.mxu0 0.0
      %899 = vmatpush.xpose.msra.mxu0 0.0
      %900 = vmatpush.xpose.msra.mxu0 0.0
      %901 = vmatpush.xpose.msra.mxu0 0.0
      %902 = vmatpush.xpose.msra.mxu0 0.0
      %903 = vmatpush.xpose.msra.mxu0 0.0
      %904 = vmatpush.xpose.msra.mxu0 %v888
      %905 = vmatpush.xpose.msra.mxu0 %v885
      %906 = vmatmul.f32.gmra.mxu0 %v879
      %v907 = vpop.f32.mrf.mxu0
      %v908 = vadd.f32 %v876, %v907
      %909 = vmatmul.f32.gmra.mxu0 %v882
      %v910 = vpop.f32.mrf.mxu0
      %v911 = vadd.f32 %v877, %v910
      %912 = vdwg.mxu0
      %v913 = vsel %vm470, %v908, -inf
      %914 = vmax.xlane.f32.xlu0 %v913
      %v915 = vpop.xlane.xlu0 %914
      %v916 = vsel %vm474, %v911, -inf
      %917 = vmax.xlane.f32.xlu0 %v916
      %v918 = vpop.xlane.xlu0 %917
      %v919 = vsub.f32 %v908, %v915
      %v920 = vsub.f32 %v911, %v918
      %v921 = vmul.f32 %v919, 1.442695
      %v922 = vpow.pop %v921
      %v923 = vmul.f32 %v920, 1.442695
      %v924 = vpow.pop %v923
      %v925 = vsel %vm470, %v922, 0.0
      %926 = vadd.xlane.f32.xlu0 %v925
      %v927 = vpop.xlane.xlu0 %926
      %v928 = vsel %vm474, %v924, 0.0
      %929 = vadd.xlane.f32.xlu0 %v928
      %v930 = vpop.xlane.xlu0 %929
      %v931 = vrcp.pop %v927
      %v932 = vrcp.pop %v930
      %v933 = vmul.f32 %v922, %v931
      %v934 = vmul.f32 %v924, %v932
      %v936 = vsel %vm470, %v933, 0
      %v939 = vsel %vm470, %v934, 0
      %v942 = vsel %vm500, %v873, 0
      %944 = vmatpush.msra.mxu0 0.0
      %945 = vmatpush.msra.mxu0 0.0
      %946 = vmatpush.msra.mxu0 0.0
      %947 = vmatpush.msra.mxu0 0.0
      %948 = vmatpush.msra.mxu0 0.0
      %949 = vmatpush.msra.mxu0 0.0
      %950 = vmatpush.msra.mxu0 0.0
      %951 = vmatpush.msra.mxu0 0.0
      %952 = vmatpush.msra.mxu0 0.0
      %953 = vmatpush.msra.mxu0 0.0
      %954 = vmatpush.msra.mxu0 0.0
      %955 = vmatpush.msra.mxu0 0.0
      %956 = vmatpush.msra.mxu0 0.0
      %957 = vmatpush.msra.mxu0 0.0
      %958 = vmatpush.msra.mxu0 %v942
      %959 = vmatpush.msra.mxu0 %v870
      %960 = vmatmul.f32.gmra.mxu0 %v936
      %v961 = vpop.f32.mrf.mxu0
      %v962 = vadd.f32 0.0, %v961
      %963 = vmatmul.f32.gmra.mxu0 %v939
      %v964 = vpop.f32.mrf.mxu0
      %v965 = vadd.f32 0.0, %v964
      %966 = vdwg.mxu0
      %s967 = scalar_lea.vmem %s7, 16
      %v968 = vld [vmem:[%s967] sm:$0xff]
      %v970 = vsel %vm434, %v962, 0
      %v973 = vsel %vm434, %v965, 0
      %975 = vmatpush.msra.mxu0 0.0
      %976 = vmatpush.msra.mxu0 0.0
      %977 = vmatpush.msra.mxu0 0.0
      %978 = vmatpush.msra.mxu0 0.0
      %979 = vmatpush.msra.mxu0 0.0
      %980 = vmatpush.msra.mxu0 0.0
      %981 = vmatpush.msra.mxu0 0.0
      %982 = vmatpush.msra.mxu0 0.0
      %983 = vmatpush.msra.mxu0 0.0
      %984 = vmatpush.msra.mxu0 0.0
      %985 = vmatpush.msra.mxu0 0.0
      %986 = vmatpush.msra.mxu0 0.0
      %987 = vmatpush.msra.mxu0 0.0
      %988 = vmatpush.msra.mxu0 0.0
      %989 = vmatpush.msra.mxu0 0.0
      %990 = vmatpush.msra.mxu0 %v968
      %991 = vmatmul.f32.gmra.mxu0 %v970
      %v992 = vpop.f32.mrf.mxu0
      %v993 = vadd.f32 0.0, %v992
      %994 = vmatmul.f32.gmra.mxu0 %v973
      %v995 = vpop.f32.mrf.mxu0
      %v996 = vadd.f32 0.0, %v995
      %997 = vdwg.mxu0
      %v998 = vadd.f32 %v779, %v993
      %v999 = vadd.f32 %v780, %v996
      %s1000 = scalar_lea.vmem %s1, 96
      %v1001 = vld [vmem:[%s1000] sm:$0xff]
      %v1002 = vld [vmem:[%s1000 + $0x8] sm:$0xff]
      %v1003 = vld [vmem:[%s1000 + $0x10] sm:$0xff]
      %v1004 = vld [vmem:[%s1000 + $0x18] sm:$0xff]
      %s1005 = scalar_lea.vmem %s4, 3
      %v1006 = vld [vmem:[%s1005] sm:$0x1]
      %v1008 = vperm.slane %v1006, 0
      %1010 = vmatpush.msra.mxu0 0.0
      %1011 = vmatpush.msra.mxu0 0.0
      %1012 = vmatpush.msra.mxu0 0.0
      %1013 = vmatpush.msra.mxu0 0.0
      %1014 = vmatpush.msra.mxu0 0.0
      %1015 = vmatpush.msra.mxu0 0.0
      %1016 = vmatpush.msra.mxu0 0.0
      %1017 = vmatpush.msra.mxu0 0.0
      %1018 = vmatpush.msra.mxu0 0.0
      %1019 = vmatpush.msra.mxu0 0.0
      %1020 = vmatpush.msra.mxu0 0.0
      %1021 = vmatpush.msra.mxu0 0.0
      %1022 = vmatpush.msra.mxu0 %v1004
      %1023 = vmatpush.msra.mxu0 %v1003
      %1024 = vmatpush.msra.mxu0 %v1002
      %1025 = vmatpush.msra.mxu0 %v1001
      %1026 = vmatmul.f32.gmra.mxu0 %v346
      %v1027 = vpop.f32.mrf.mxu0
      %v1028 = vadd.f32 %v1008, %v1027
      %1029 = vmatmul.f32.gmra.mxu0 %v349
      %v1030 = vpop.f32.mrf.mxu0
      %v1031 = vadd.f32 %v1008, %v1030
      %1032 = vdwg.mxu0
      %s1033 = scalar_lea.vmem %s2, 96
      %v1034 = vld [vmem:[%s1033] sm:$0xff]
      %v1035 = vld [vmem:[%s1033 + $0x8] sm:$0xff]
      %v1036 = vld [vmem:[%s1033 + $0x10] sm:$0xff]
      %v1037 = vld [vmem:[%s1033 + $0x18] sm:$0xff]
      %1038 = vmatpush.msra.mxu0 0.0
      %1039 = vmatpush.msra.mxu0 0.0
      %1040 = vmatpush.msra.mxu0 0.0
      %1041 = vmatpush.msra.mxu0 0.0
      %1042 = vmatpush.msra.mxu0 0.0
      %1043 = vmatpush.msra.mxu0 0.0
      %1044 = vmatpush.msra.mxu0 0.0
      %1045 = vmatpush.msra.mxu0 0.0
      %1046 = vmatpush.msra.mxu0 0.0
      %1047 = vmatpush.msra.mxu0 0.0
      %1048 = vmatpush.msra.mxu0 0.0
      %1049 = vmatpush.msra.mxu0 0.0
      %1050 = vmatpush.msra.mxu0 %v1037
      %1051 = vmatpush.msra.mxu0 %v1036
      %1052 = vmatpush.msra.mxu0 %v1035
      %1053 = vmatpush.msra.mxu0 %v1034
      %1054 = vmatmul.f32.gmra.mxu0 %v346
      %v1055 = vpop.f32.mrf.mxu0
      %v1056 = vadd.f32 0.0, %v1055
      %1057 = vmatmul.f32.gmra.mxu0 %v349
      %v1058 = vpop.f32.mrf.mxu0
      %v1059 = vadd.f32 0.0, %v1058
      %1060 = vdwg.mxu0
      %s1061 = scalar_lea.vmem %s3, 96
      %v1062 = vld [vmem:[%s1061] sm:$0xff]
      %v1063 = vld [vmem:[%s1061 + $0x8] sm:$0xff]
      %v1064 = vld [vmem:[%s1061 + $0x10] sm:$0xff]
      %v1065 = vld [vmem:[%s1061 + $0x18] sm:$0xff]
      %s1066 = scalar_lea.vmem %s5, 3
      %v1067 = vld [vmem:[%s1066] sm:$0x1]
      %v1069 = vperm.slane %v1067, 0
      %1071 = vmatpush.msra.mxu0 0.0
      %1072 = vmatpush.msra.mxu0 0.0
      %1073 = vmatpush.msra.mxu0 0.0
      %1074 = vmatpush.msra.mxu0 0.0
      %1075 = vmatpush.msra.mxu0 0.0
      %1076 = vmatpush.msra.mxu0 0.0
      %1077 = vmatpush.msra.mxu0 0.0
      %1078 = vmatpush.msra.mxu0 0.0
      %1079 = vmatpush.msra.mxu0 0.0
      %1080 = vmatpush.msra.mxu0 0.0
      %1081 = vmatpush.msra.mxu0 0.0
      %1082 = vmatpush.msra.mxu0 0.0
      %1083 = vmatpush.msra.mxu0 %v1065
      %1084 = vmatpush.msra.mxu0 %v1064
      %1085 = vmatpush.msra.mxu0 %v1063
      %1086 = vmatpush.msra.mxu0 %v1062
      %1087 = vmatmul.f32.gmra.mxu0 %v346
      %v1088 = vpop.f32.mrf.mxu0
      %v1089 = vadd.f32 %v1069, %v1088
      %1090 = vmatmul.f32.gmra.mxu0 %v349
      %v1091 = vpop.f32.mrf.mxu0
      %v1092 = vadd.f32 %v1069, %v1091
      %1093 = vdwg.mxu0
      %s1094 = scalar_lea.vmem %s6, 48
      %v1095 = vld [vmem:[%s1094] sm:$0xff]
      %v1096 = vld [vmem:[%s1094 + $0x8] sm:$0x3]
      %v1098 = vsel %vm434, %v1028, 0
      %v1101 = vsel %vm434, %v1031, 0
      %v1104 = vsel %vm434, %v1056, 0
      %v1107 = vsel %vm434, %v1059, 0
      %1109 = vmatpush.xpose.msra.mxu0 0.0
      %1110 = vmatpush.xpose.msra.mxu0 0.0
      %1111 = vmatpush.xpose.msra.mxu0 0.0
      %1112 = vmatpush.xpose.msra.mxu0 0.0
      %1113 = vmatpush.xpose.msra.mxu0 0.0
      %1114 = vmatpush.xpose.msra.mxu0 0.0
      %1115 = vmatpush.xpose.msra.mxu0 0.0
      %1116 = vmatpush.xpose.msra.mxu0 0.0
      %1117 = vmatpush.xpose.msra.mxu0 0.0
      %1118 = vmatpush.xpose.msra.mxu0 0.0
      %1119 = vmatpush.xpose.msra.mxu0 0.0
      %1120 = vmatpush.xpose.msra.mxu0 0.0
      %1121 = vmatpush.xpose.msra.mxu0 0.0
      %1122 = vmatpush.xpose.msra.mxu0 0.0
      %1123 = vmatpush.xpose.msra.mxu0 %v1107
      %1124 = vmatpush.xpose.msra.mxu0 %v1104
      %1125 = vmatmul.f32.gmra.mxu0 %v1098
      %v1126 = vpop.f32.mrf.mxu0
      %v1127 = vadd.f32 %v1095, %v1126
      %1128 = vmatmul.f32.gmra.mxu0 %v1101
      %v1129 = vpop.f32.mrf.mxu0
      %v1130 = vadd.f32 %v1096, %v1129
      %1131 = vdwg.mxu0
      %v1132 = vsel %vm470, %v1127, -inf
      %1133 = vmax.xlane.f32.xlu0 %v1132
      %v1134 = vpop.xlane.xlu0 %1133
      %v1135 = vsel %vm474, %v1130, -inf
      %1136 = vmax.xlane.f32.xlu0 %v1135
      %v1137 = vpop.xlane.xlu0 %1136
      %v1138 = vsub.f32 %v1127, %v1134
      %v1139 = vsub.f32 %v1130, %v1137
      %v1140 = vmul.f32 %v1138, 1.442695
      %v1141 = vpow.pop %v1140
      %v1142 = vmul.f32 %v1139, 1.442695
      %v1143 = vpow.pop %v1142
      %v1144 = vsel %vm470, %v1141, 0.0
      %1145 = vadd.xlane.f32.xlu0 %v1144
      %v1146 = vpop.xlane.xlu0 %1145
      %v1147 = vsel %vm474, %v1143, 0.0
      %1148 = vadd.xlane.f32.xlu0 %v1147
      %v1149 = vpop.xlane.xlu0 %1148
      %v1150 = vrcp.pop %v1146
      %v1151 = vrcp.pop %v1149
      %v1152 = vmul.f32 %v1141, %v1150
      %v1153 = vmul.f32 %v1143, %v1151
      %v1155 = vsel %vm470, %v1152, 0
      %v1158 = vsel %vm470, %v1153, 0
      %v1161 = vsel %vm500, %v1092, 0
      %1163 = vmatpush.msra.mxu0 0.0
      %1164 = vmatpush.msra.mxu0 0.0
      %1165 = vmatpush.msra.mxu0 0.0
      %1166 = vmatpush.msra.mxu0 0.0
      %1167 = vmatpush.msra.mxu0 0.0
      %1168 = vmatpush.msra.mxu0 0.0
      %1169 = vmatpush.msra.mxu0 0.0
      %1170 = vmatpush.msra.mxu0 0.0
      %1171 = vmatpush.msra.mxu0 0.0
      %1172 = vmatpush.msra.mxu0 0.0
      %1173 = vmatpush.msra.mxu0 0.0
      %1174 = vmatpush.msra.mxu0 0.0
      %1175 = vmatpush.msra.mxu0 0.0
      %1176 = vmatpush.msra.mxu0 0.0
      %1177 = vmatpush.msra.mxu0 %v1161
      %1178 = vmatpush.msra.mxu0 %v1089
      %1179 = vmatmul.f32.gmra.mxu0 %v1155
      %v1180 = vpop.f32.mrf.mxu0
      %v1181 = vadd.f32 0.0, %v1180
      %1182 = vmatmul.f32.gmra.mxu0 %v1158
      %v1183 = vpop.f32.mrf.mxu0
      %v1184 = vadd.f32 0.0, %v1183
      %1185 = vdwg.mxu0
      %s1186 = scalar_lea.vmem %s7, 24
      %v1187 = vld [vmem:[%s1186] sm:$0xff]
      %v1189 = vsel %vm434, %v1181, 0
      %v1192 = vsel %vm434, %v1184, 0
      %1194 = vmatpush.msra.mxu0 0.0
      %1195 = vmatpush.msra.mxu0 0.0
      %1196 = vmatpush.msra.mxu0 0.0
      %1197 = vmatpush.msra.mxu0 0.0
      %1198 = vmatpush.msra.mxu0 0.0
      %1199 = vmatpush.msra.mxu0 0.0
      %1200 = vmatpush.msra.mxu0 0.0
      %1201 = vmatpush.msra.mxu0 0.0
      %1202 = vmatpush.msra.mxu0 0.0
      %1203 = vmatpush.msra.mxu0 0.0
      %1204 = vmatpush.msra.mxu0 0.0
      %1205 = vmatpush.msra.mxu0 0.0
      %1206 = vmatpush.msra.mxu0 0.0
      %1207 = vmatpush.msra.mxu0 0.0
      %1208 = vmatpush.msra.mxu0 0.0
      %1209 = vmatpush.msra.mxu0 %v1187
      %1210 = vmatmul.f32.gmra.mxu0 %v1189
      %v1211 = vpop.f32.mrf.mxu0
      %v1212 = vadd.f32 0.0, %v1211
      %1213 = vmatmul.f32.gmra.mxu0 %v1192
      %v1214 = vpop.f32.mrf.mxu0
      %v1215 = vadd.f32 0.0, %v1214
      %1216 = vdwg.mxu0
      %v1217 = vadd.f32 %v998, %v1212
      %v1218 = vadd.f32 %v999, %v1215
      %1219 = vst.msk [vmem:[%s332] sm:$0xff] %vm344, %v1217
      %vm1220 = vcmask 254976
      %1221 = vst.msk [vmem:[%s332 + $0x8] sm:$0x3] %vm1220, %v1218
      %p1222 = scmp.lt.s32.totalorder %s20, 1
      %s1223 = scalar_select %p1222, %s20, 1
      %s1224 = smul.addr %s1223, 2
      %s1225 = smul.addr %s1224, 8
      %s1226 = scalar_lea.vmem %s9, %s1225
      // Predicated region
      $region57: #{tpu_custom_call.1} parent=55 // pred_check
        %p1227 = pneg %p232
      $region58: #{tpu_custom_call.1} parent=55 // pred_check_branch
        %1229 = sbr.rel (%p1227) target = $region60
      $region59: #{tpu_custom_call.1} parent=55 // pred_region
        _
      $region60: #{tpu_custom_call.1} parent=55 // pred_fallthru
        _
    $region56: #{tpu_custom_call.1} parent=5 // pred_fallthru
      _
    %p1230 = scmp.le.s32.totalorder 2, %s15
    // Predicated region
    $region61: #{tpu_custom_call.1} parent=5 // pred_check
      %p1231 = pneg %p1230
    $region62: #{tpu_custom_call.1} parent=5 // pred_check_branch
      %1233 = sbr.rel (%p1231) target = $region64
    $region63: #{tpu_custom_call.1} parent=5 // pred_region
      %s1234 = ssub.s32 %s15, 2
      // Predicated region
      $region65: #{tpu_custom_call.1} parent=63 // pred_check
        %p1235 = pneg %p238
      $region66: #{tpu_custom_call.1} parent=63 // pred_check_branch
        %1237 = sbr.rel (%p1235) target = $region68
      $region67: #{tpu_custom_call.1} parent=63 // pred_region
        %p1238 = scmp.lt.s32.totalorder %s21, 1
        %s1239 = scalar_select %p1238, %s21, 1
        %s1240 = smul.addr %s1239, 2
        %s1241 = smul.addr %s1240, 8
        %s1242 = scalar_lea.vmem %s9, %s1241
      $region68: #{tpu_custom_call.1} parent=63 // pred_fallthru
        _
    $region64: #{tpu_custom_call.1} parent=5 // pred_fallthru
      _
  $region6: #{tpu_custom_call.1} parent=0 // loop_footer
    %s19 = sadd.s32 1, %s15
  $region7: #{tpu_custom_call.1} parent=0 // loop_footer_branch
    %14 = sbr.rel target = $region3
  $region8: #{tpu_custom_call.1} parent=0 // loop_exit
    _

</llo_original>
